<compile_context>
chip_gen: v7x
topology: tpu7x:2x2x1
jax: 0.10.0
libtpu: 0.0.40
codegen_flags: <defaults>
</compile_context>

<pallas_src>
import jax
import jax.numpy as jnp
from jax.experimental import pallas as pl
from jax.experimental.pallas import tpu as pltpu

# Target adaptive pool sizes, in the order the module concatenates them.
_POOL_SIZES = ((1, 1), (4, 5), (8, 10), (15, 20))
_OUT_ROWS = sum(oh * ow for oh, ow in _POOL_SIZES)   # 401
_C = 256
_C_BLOCK = 128                                        # full lane width per grid step


def _region_bounds(out_size: int, in_size: int):
    """PyTorch adaptive-pool regions: output i pools [floor(i*L/o), ceil((i+1)*L/o))."""
    return [((i * in_size) // out_size, -(-((i + 1) * in_size) // out_size))
            for i in range(out_size)]


def _adaptive_max_pool(x3, oh: int, ow: int):
    """x3: (H, W, C) value -> (oh, ow, C) adaptive max pool (PyTorch regions).

    All slice bounds are trace-time Python ints -> static slices + max; no
    masks, no captured constants, roughly one pass over the input per call.
    """
    H, W, _ = x3.shape
    # Pool along H: leading-axis reduce == cheap vreg-wise maximum on the VPU.
    hbands = [jnp.max(x3[hs:he], axis=0, keepdims=True)
              for hs, he in _region_bounds(oh, H)]
    ph = jnp.concatenate(hbands, axis=0)              # (oh, W, C)
    # Pool along W: small sublane-axis slices.
    wbands = [jnp.max(ph[:, ws:we, :], axis=1, keepdims=True)
              for ws, we in _region_bounds(ow, W)]
    return jnp.concatenate(wbands, axis=1)            # (oh, ow, C)


def _pool_kernel(x_ref, o_ref):
    x = x_ref[...]                                    # (H, W, 128) current channel block

    p3 = _adaptive_max_pool(x, 15, 20)                # (15, 20, C) -- from feature map
    p2 = _adaptive_max_pool(x, 8, 10)                 # (8, 10, C)  -- from feature map
    # 4|8 and 5|10 => each (4,5) region is exactly the union of a 2x2 block of
    # (8,10) regions, and (1,1) is the global max => derive them from the
    # coarser grids (bit-exact, saves two full passes over the feature map).
    p1 = _adaptive_max_pool(p2, 4, 5)                 # (4, 5, C)
    p0 = _adaptive_max_pool(p1, 1, 1)                 # (1, 1, C)

    # Row order matches PyTorch view(256, oh*ow).transpose(1, 0): row = i*ow + j.
    # Per-H-band stores avoid (oh,ow,C)->(oh*ow,C) reshapes across unaligned
    # sublane tiles; the handful of small masked stores is negligible here.
    row = 0
    for p, (oh, ow) in zip((p0, p1, p2, p3), _POOL_SIZES):
        for i in range(oh):
            o_ref[row + i * ow: row + (i + 1) * ow, :] = p[i]
        row += oh * ow


def pool_forward_hwc(x_hwc: jax.Array) -> jax.Array:
    """x_hwc: (H, W, 256) -> (401, 256). Preferred entry if the producer is HWC."""
    H, W, C = x_hwc.shape
    assert C == _C, "module hard-codes view(256, -1)"
    n_blk = C // _C_BLOCK                              # 2 channel blocks of 128 lanes
    return pl.pallas_call(
        _pool_kernel,
        out_shape=jax.ShapeDtypeStruct((_OUT_ROWS, C), x_hwc.dtype),
        grid=(n_blk,),
        in_specs=[pl.BlockSpec((H, W, _C_BLOCK), lambda i: (0, 0, i))],
        out_specs=pl.BlockSpec((_OUT_ROWS, _C_BLOCK), lambda i: (0, i)),
        compiler_params=pltpu.CompilerParams(
            dimension_semantics=("parallel",)),
    )(x_hwc)


def pool_forward(x_nchw: jax.Array) -> jax.Array:
    """x_nchw: (1, 256, H, W) -> (401, 256), matching the PyTorch Pool module."""
    n, c, H, W = x_nchw.shape
    assert n == 1 and c == _C, "module hard-codes view(256, -1) with batch 1"
    # NCHW -> HWC so channels sit on the 128-wide lane dimension. If the
    # producer can emit HWC directly, call pool_forward_hwc and skip this
    # extra HBM round trip.
    x_hwc = jnp.transpose(x_nchw[0], (1, 2, 0))
    return pool_forward_hwc(x_hwc)


def _reference_pool(x_nchw: jax.Array) -> jax.Array:
    """Pure-JAX reference with explicit PyTorch adaptive_max_pool2d regions."""
    _, c, H, W = x_nchw.shape
    pieces = []
    for oh, ow in _POOL_SIZES:
        rows = []
        for i in range(oh):
            hs, he = (i * H) // oh, -(-((i + 1) * H) // oh)
            for j in range(ow):
                ws, we = (j * W) // ow, -(-((j + 1) * W) // ow)
                rows.append(jnp.max(x_nchw[0, :, hs:he, ws:we], axis=(1, 2)))
        pieces.append(jnp.stack(rows, axis=0))         # (oh*ow, C)
    return jnp.concatenate(pieces, axis=0)


if __name__ == "__main__":
    key = jax.random.PRNGKey(0)
    # Small spatial shape; channels must be 256 (module hard-codes view(256, -1)).
    x = jax.random.normal(key, (1, _C, 16, 20), dtype=jnp.float32)

    out = jax.block_until_ready(pool_forward(x))
    assert out.shape == (_OUT_ROWS, _C), out.shape

    ref = jax.block_until_ready(_reference_pool(x))
    assert jnp.allclose(out, ref, atol=1e-6, rtol=1e-6), "mismatch vs reference"

    print("KERNEL_OK")
</pallas_src>

<mosaic_0001>
module attributes {stable_mosaic.version = 11 : i64} {
  func.func @_pool_kernel(%arg0: i32, %arg1: memref<16x20x128xf32, #tpu.memory_space<vmem>>, %arg2: memref<401x128xf32, #tpu.memory_space<vmem>>) attributes {dimension_semantics = [#tpu.dimension_semantics<parallel>], iteration_bounds = array<i64: 2>, scalar_prefetch = 0 : i64, scratch_operands = 0 : i64, tpu.core_type = #tpu.core_type<tc>, window_params = [{transform_indices = @transform_0, window_bounds = array<i64: 16, 20, 128>}, {transform_indices = @transform_1, window_bounds = array<i64: 401, 128>}]} {
    %c0 = arith.constant 0 : index
    %c0_0 = arith.constant 0 : index
    %c0_1 = arith.constant 0 : index
    %0 = vector.load %arg1[%c0, %c0_0, %c0_1] : memref<16x20x128xf32, #tpu.memory_space<vmem>>, vector<16x20x128xf32>
    %1 = vector.extract_strided_slice %0 {offsets = [0, 0, 0], sizes = [2, 20, 128], strides = [1, 1, 1]} : vector<16x20x128xf32> to vector<2x20x128xf32>
    %cst = arith.constant dense<0xFF800000> : vector<20x128xf32>
    %2 = vector.multi_reduction <maximumf>, %1, %cst [0] : vector<2x20x128xf32> to vector<20x128xf32>
    %3 = vector.shape_cast %2 : vector<20x128xf32> to vector<1x20x128xf32>
    %4 = vector.extract_strided_slice %0 {offsets = [1, 0, 0], sizes = [2, 20, 128], strides = [1, 1, 1]} : vector<16x20x128xf32> to vector<2x20x128xf32>
    %cst_2 = arith.constant dense<0xFF800000> : vector<20x128xf32>
    %5 = vector.multi_reduction <maximumf>, %4, %cst_2 [0] : vector<2x20x128xf32> to vector<20x128xf32>
    %6 = vector.shape_cast %5 : vector<20x128xf32> to vector<1x20x128xf32>
    %7 = vector.extract_strided_slice %0 {offsets = [2, 0, 0], sizes = [2, 20, 128], strides = [1, 1, 1]} : vector<16x20x128xf32> to vector<2x20x128xf32>
    %cst_3 = arith.constant dense<0xFF800000> : vector<20x128xf32>
    %8 = vector.multi_reduction <maximumf>, %7, %cst_3 [0] : vector<2x20x128xf32> to vector<20x128xf32>
    %9 = vector.shape_cast %8 : vector<20x128xf32> to vector<1x20x128xf32>
    %10 = vector.extract_strided_slice %0 {offsets = [3, 0, 0], sizes = [2, 20, 128], strides = [1, 1, 1]} : vector<16x20x128xf32> to vector<2x20x128xf32>
    %cst_4 = arith.constant dense<0xFF800000> : vector<20x128xf32>
    %11 = vector.multi_reduction <maximumf>, %10, %cst_4 [0] : vector<2x20x128xf32> to vector<20x128xf32>
    %12 = vector.shape_cast %11 : vector<20x128xf32> to vector<1x20x128xf32>
    %13 = vector.extract_strided_slice %0 {offsets = [4, 0, 0], sizes = [2, 20, 128], strides = [1, 1, 1]} : vector<16x20x128xf32> to vector<2x20x128xf32>
    %cst_5 = arith.constant dense<0xFF800000> : vector<20x128xf32>
    %14 = vector.multi_reduction <maximumf>, %13, %cst_5 [0] : vector<2x20x128xf32> to vector<20x128xf32>
    %15 = vector.shape_cast %14 : vector<20x128xf32> to vector<1x20x128xf32>
    %16 = vector.extract_strided_slice %0 {offsets = [5, 0, 0], sizes = [2, 20, 128], strides = [1, 1, 1]} : vector<16x20x128xf32> to vector<2x20x128xf32>
    %cst_6 = arith.constant dense<0xFF800000> : vector<20x128xf32>
    %17 = vector.multi_reduction <maximumf>, %16, %cst_6 [0] : vector<2x20x128xf32> to vector<20x128xf32>
    %18 = vector.shape_cast %17 : vector<20x128xf32> to vector<1x20x128xf32>
    %19 = vector.extract_strided_slice %0 {offsets = [6, 0, 0], sizes = [2, 20, 128], strides = [1, 1, 1]} : vector<16x20x128xf32> to vector<2x20x128xf32>
    %cst_7 = arith.constant dense<0xFF800000> : vector<20x128xf32>
    %20 = vector.multi_reduction <maximumf>, %19, %cst_7 [0] : vector<2x20x128xf32> to vector<20x128xf32>
    %21 = vector.shape_cast %20 : vector<20x128xf32> to vector<1x20x128xf32>
    %22 = vector.extract_strided_slice %0 {offsets = [7, 0, 0], sizes = [2, 20, 128], strides = [1, 1, 1]} : vector<16x20x128xf32> to vector<2x20x128xf32>
    %cst_8 = arith.constant dense<0xFF800000> : vector<20x128xf32>
    %23 = vector.multi_reduction <maximumf>, %22, %cst_8 [0] : vector<2x20x128xf32> to vector<20x128xf32>
    %24 = vector.shape_cast %23 : vector<20x128xf32> to vector<1x20x128xf32>
    %25 = vector.extract_strided_slice %0 {offsets = [8, 0, 0], sizes = [2, 20, 128], strides = [1, 1, 1]} : vector<16x20x128xf32> to vector<2x20x128xf32>
    %cst_9 = arith.constant dense<0xFF800000> : vector<20x128xf32>
    %26 = vector.multi_reduction <maximumf>, %25, %cst_9 [0] : vector<2x20x128xf32> to vector<20x128xf32>
    %27 = vector.shape_cast %26 : vector<20x128xf32> to vector<1x20x128xf32>
    %28 = vector.extract_strided_slice %0 {offsets = [9, 0, 0], sizes = [2, 20, 128], strides = [1, 1, 1]} : vector<16x20x128xf32> to vector<2x20x128xf32>
    %cst_10 = arith.constant dense<0xFF800000> : vector<20x128xf32>
    %29 = vector.multi_reduction <maximumf>, %28, %cst_10 [0] : vector<2x20x128xf32> to vector<20x128xf32>
    %30 = vector.shape_cast %29 : vector<20x128xf32> to vector<1x20x128xf32>
    %31 = vector.extract_strided_slice %0 {offsets = [10, 0, 0], sizes = [2, 20, 128], strides = [1, 1, 1]} : vector<16x20x128xf32> to vector<2x20x128xf32>
    %cst_11 = arith.constant dense<0xFF800000> : vector<20x128xf32>
    %32 = vector.multi_reduction <maximumf>, %31, %cst_11 [0] : vector<2x20x128xf32> to vector<20x128xf32>
    %33 = vector.shape_cast %32 : vector<20x128xf32> to vector<1x20x128xf32>
    %34 = vector.extract_strided_slice %0 {offsets = [11, 0, 0], sizes = [2, 20, 128], strides = [1, 1, 1]} : vector<16x20x128xf32> to vector<2x20x128xf32>
    %cst_12 = arith.constant dense<0xFF800000> : vector<20x128xf32>
    %35 = vector.multi_reduction <maximumf>, %34, %cst_12 [0] : vector<2x20x128xf32> to vector<20x128xf32>
    %36 = vector.shape_cast %35 : vector<20x128xf32> to vector<1x20x128xf32>
    %37 = vector.extract_strided_slice %0 {offsets = [12, 0, 0], sizes = [2, 20, 128], strides = [1, 1, 1]} : vector<16x20x128xf32> to vector<2x20x128xf32>
    %cst_13 = arith.constant dense<0xFF800000> : vector<20x128xf32>
    %38 = vector.multi_reduction <maximumf>, %37, %cst_13 [0] : vector<2x20x128xf32> to vector<20x128xf32>
    %39 = vector.shape_cast %38 : vector<20x128xf32> to vector<1x20x128xf32>
    %40 = vector.extract_strided_slice %0 {offsets = [13, 0, 0], sizes = [2, 20, 128], strides = [1, 1, 1]} : vector<16x20x128xf32> to vector<2x20x128xf32>
    %cst_14 = arith.constant dense<0xFF800000> : vector<20x128xf32>
    %41 = vector.multi_reduction <maximumf>, %40, %cst_14 [0] : vector<2x20x128xf32> to vector<20x128xf32>
    %42 = vector.shape_cast %41 : vector<20x128xf32> to vector<1x20x128xf32>
    %43 = vector.extract_strided_slice %0 {offsets = [14, 0, 0], sizes = [2, 20, 128], strides = [1, 1, 1]} : vector<16x20x128xf32> to vector<2x20x128xf32>
    %cst_15 = arith.constant dense<0xFF800000> : vector<20x128xf32>
    %44 = vector.multi_reduction <maximumf>, %43, %cst_15 [0] : vector<2x20x128xf32> to vector<20x128xf32>
    %45 = vector.shape_cast %44 : vector<20x128xf32> to vector<1x20x128xf32>
    %46 = tpu.concatenate %3, %6, %9, %12, %15, %18, %21, %24, %27, %30, %33, %36, %39, %42, %45 in 0 : vector<1x20x128xf32>, vector<1x20x128xf32>, vector<1x20x128xf32>, vector<1x20x128xf32>, vector<1x20x128xf32>, vector<1x20x128xf32>, vector<1x20x128xf32>, vector<1x20x128xf32>, vector<1x20x128xf32>, vector<1x20x128xf32>, vector<1x20x128xf32>, vector<1x20x128xf32>, vector<1x20x128xf32>, vector<1x20x128xf32>, vector<1x20x128xf32> -> vector<15x20x128xf32>
    %47 = vector.extract_strided_slice %46 {offsets = [0, 0, 0], sizes = [15, 1, 128], strides = [1, 1, 1]} : vector<15x20x128xf32> to vector<15x1x128xf32>
    %cst_16 = arith.constant dense<0xFF800000> : vector<15x128xf32>
    %48 = vector.multi_reduction <maximumf>, %47, %cst_16 [1] : vector<15x1x128xf32> to vector<15x128xf32>
    %49 = vector.shape_cast %48 : vector<15x128xf32> to vector<15x1x128xf32>
    %50 = vector.extract_strided_slice %46 {offsets = [0, 1, 0], sizes = [15, 1, 128], strides = [1, 1, 1]} : vector<15x20x128xf32> to vector<15x1x128xf32>
    %cst_17 = arith.constant dense<0xFF800000> : vector<15x128xf32>
    %51 = vector.multi_reduction <maximumf>, %50, %cst_17 [1] : vector<15x1x128xf32> to vector<15x128xf32>
    %52 = vector.shape_cast %51 : vector<15x128xf32> to vector<15x1x128xf32>
    %53 = vector.extract_strided_slice %46 {offsets = [0, 2, 0], sizes = [15, 1, 128], strides = [1, 1, 1]} : vector<15x20x128xf32> to vector<15x1x128xf32>
    %cst_18 = arith.constant dense<0xFF800000> : vector<15x128xf32>
    %54 = vector.multi_reduction <maximumf>, %53, %cst_18 [1] : vector<15x1x128xf32> to vector<15x128xf32>
    %55 = vector.shape_cast %54 : vector<15x128xf32> to vector<15x1x128xf32>
    %56 = vector.extract_strided_slice %46 {offsets = [0, 3, 0], sizes = [15, 1, 128], strides = [1, 1, 1]} : vector<15x20x128xf32> to vector<15x1x128xf32>
    %cst_19 = arith.constant dense<0xFF800000> : vector<15x128xf32>
    %57 = vector.multi_reduction <maximumf>, %56, %cst_19 [1] : vector<15x1x128xf32> to vector<15x128xf32>
    %58 = vector.shape_cast %57 : vector<15x128xf32> to vector<15x1x128xf32>
    %59 = vector.extract_strided_slice %46 {offsets = [0, 4, 0], sizes = [15, 1, 128], strides = [1, 1, 1]} : vector<15x20x128xf32> to vector<15x1x128xf32>
    %cst_20 = arith.constant dense<0xFF800000> : vector<15x128xf32>
    %60 = vector.multi_reduction <maximumf>, %59, %cst_20 [1] : vector<15x1x128xf32> to vector<15x128xf32>
    %61 = vector.shape_cast %60 : vector<15x128xf32> to vector<15x1x128xf32>
    %62 = vector.extract_strided_slice %46 {offsets = [0, 5, 0], sizes = [15, 1, 128], strides = [1, 1, 1]} : vector<15x20x128xf32> to vector<15x1x128xf32>
    %cst_21 = arith.constant dense<0xFF800000> : vector<15x128xf32>
    %63 = vector.multi_reduction <maximumf>, %62, %cst_21 [1] : vector<15x1x128xf32> to vector<15x128xf32>
    %64 = vector.shape_cast %63 : vector<15x128xf32> to vector<15x1x128xf32>
    %65 = vector.extract_strided_slice %46 {offsets = [0, 6, 0], sizes = [15, 1, 128], strides = [1, 1, 1]} : vector<15x20x128xf32> to vector<15x1x128xf32>
    %cst_22 = arith.constant dense<0xFF800000> : vector<15x128xf32>
    %66 = vector.multi_reduction <maximumf>, %65, %cst_22 [1] : vector<15x1x128xf32> to vector<15x128xf32>
    %67 = vector.shape_cast %66 : vector<15x128xf32> to vector<15x1x128xf32>
    %68 = vector.extract_strided_slice %46 {offsets = [0, 7, 0], sizes = [15, 1, 128], strides = [1, 1, 1]} : vector<15x20x128xf32> to vector<15x1x128xf32>
    %cst_23 = arith.constant dense<0xFF800000> : vector<15x128xf32>
    %69 = vector.multi_reduction <maximumf>, %68, %cst_23 [1] : vector<15x1x128xf32> to vector<15x128xf32>
    %70 = vector.shape_cast %69 : vector<15x128xf32> to vector<15x1x128xf32>
    %71 = vector.extract_strided_slice %46 {offsets = [0, 8, 0], sizes = [15, 1, 128], strides = [1, 1, 1]} : vector<15x20x128xf32> to vector<15x1x128xf32>
    %cst_24 = arith.constant dense<0xFF800000> : vector<15x128xf32>
    %72 = vector.multi_reduction <maximumf>, %71, %cst_24 [1] : vector<15x1x128xf32> to vector<15x128xf32>
    %73 = vector.shape_cast %72 : vector<15x128xf32> to vector<15x1x128xf32>
    %74 = vector.extract_strided_slice %46 {offsets = [0, 9, 0], sizes = [15, 1, 128], strides = [1, 1, 1]} : vector<15x20x128xf32> to vector<15x1x128xf32>
    %cst_25 = arith.constant dense<0xFF800000> : vector<15x128xf32>
    %75 = vector.multi_reduction <maximumf>, %74, %cst_25 [1] : vector<15x1x128xf32> to vector<15x128xf32>
    %76 = vector.shape_cast %75 : vector<15x128xf32> to vector<15x1x128xf32>
    %77 = vector.extract_strided_slice %46 {offsets = [0, 10, 0], sizes = [15, 1, 128], strides = [1, 1, 1]} : vector<15x20x128xf32> to vector<15x1x128xf32>
    %cst_26 = arith.constant dense<0xFF800000> : vector<15x128xf32>
    %78 = vector.multi_reduction <maximumf>, %77, %cst_26 [1] : vector<15x1x128xf32> to vector<15x128xf32>
    %79 = vector.shape_cast %78 : vector<15x128xf32> to vector<15x1x128xf32>
    %80 = vector.extract_strided_slice %46 {offsets = [0, 11, 0], sizes = [15, 1, 128], strides = [1, 1, 1]} : vector<15x20x128xf32> to vector<15x1x128xf32>
    %cst_27 = arith.constant dense<0xFF800000> : vector<15x128xf32>
    %81 = vector.multi_reduction <maximumf>, %80, %cst_27 [1] : vector<15x1x128xf32> to vector<15x128xf32>
    %82 = vector.shape_cast %81 : vector<15x128xf32> to vector<15x1x128xf32>
    %83 = vector.extract_strided_slice %46 {offsets = [0, 12, 0], sizes = [15, 1, 128], strides = [1, 1, 1]} : vector<15x20x128xf32> to vector<15x1x128xf32>
    %cst_28 = arith.constant dense<0xFF800000> : vector<15x128xf32>
    %84 = vector.multi_reduction <maximumf>, %83, %cst_28 [1] : vector<15x1x128xf32> to vector<15x128xf32>
    %85 = vector.shape_cast %84 : vector<15x128xf32> to vector<15x1x128xf32>
    %86 = vector.extract_strided_slice %46 {offsets = [0, 13, 0], sizes = [15, 1, 128], strides = [1, 1, 1]} : vector<15x20x128xf32> to vector<15x1x128xf32>
    %cst_29 = arith.constant dense<0xFF800000> : vector<15x128xf32>
    %87 = vector.multi_reduction <maximumf>, %86, %cst_29 [1] : vector<15x1x128xf32> to vector<15x128xf32>
    %88 = vector.shape_cast %87 : vector<15x128xf32> to vector<15x1x128xf32>
    %89 = vector.extract_strided_slice %46 {offsets = [0, 14, 0], sizes = [15, 1, 128], strides = [1, 1, 1]} : vector<15x20x128xf32> to vector<15x1x128xf32>
    %cst_30 = arith.constant dense<0xFF800000> : vector<15x128xf32>
    %90 = vector.multi_reduction <maximumf>, %89, %cst_30 [1] : vector<15x1x128xf32> to vector<15x128xf32>
    %91 = vector.shape_cast %90 : vector<15x128xf32> to vector<15x1x128xf32>
    %92 = vector.extract_strided_slice %46 {offsets = [0, 15, 0], sizes = [15, 1, 128], strides = [1, 1, 1]} : vector<15x20x128xf32> to vector<15x1x128xf32>
    %cst_31 = arith.constant dense<0xFF800000> : vector<15x128xf32>
    %93 = vector.multi_reduction <maximumf>, %92, %cst_31 [1] : vector<15x1x128xf32> to vector<15x128xf32>
    %94 = vector.shape_cast %93 : vector<15x128xf32> to vector<15x1x128xf32>
    %95 = vector.extract_strided_slice %46 {offsets = [0, 16, 0], sizes = [15, 1, 128], strides = [1, 1, 1]} : vector<15x20x128xf32> to vector<15x1x128xf32>
    %cst_32 = arith.constant dense<0xFF800000> : vector<15x128xf32>
    %96 = vector.multi_reduction <maximumf>, %95, %cst_32 [1] : vector<15x1x128xf32> to vector<15x128xf32>
    %97 = vector.shape_cast %96 : vector<15x128xf32> to vector<15x1x128xf32>
    %98 = vector.extract_strided_slice %46 {offsets = [0, 17, 0], sizes = [15, 1, 128], strides = [1, 1, 1]} : vector<15x20x128xf32> to vector<15x1x128xf32>
    %cst_33 = arith.constant dense<0xFF800000> : vector<15x128xf32>
    %99 = vector.multi_reduction <maximumf>, %98, %cst_33 [1] : vector<15x1x128xf32> to vector<15x128xf32>
    %100 = vector.shape_cast %99 : vector<15x128xf32> to vector<15x1x128xf32>
    %101 = vector.extract_strided_slice %46 {offsets = [0, 18, 0], sizes = [15, 1, 128], strides = [1, 1, 1]} : vector<15x20x128xf32> to vector<15x1x128xf32>
    %cst_34 = arith.constant dense<0xFF800000> : vector<15x128xf32>
    %102 = vector.multi_reduction <maximumf>, %101, %cst_34 [1] : vector<15x1x128xf32> to vector<15x128xf32>
    %103 = vector.shape_cast %102 : vector<15x128xf32> to vector<15x1x128xf32>
    %104 = vector.extract_strided_slice %46 {offsets = [0, 19, 0], sizes = [15, 1, 128], strides = [1, 1, 1]} : vector<15x20x128xf32> to vector<15x1x128xf32>
    %cst_35 = arith.constant dense<0xFF800000> : vector<15x128xf32>
    %105 = vector.multi_reduction <maximumf>, %104, %cst_35 [1] : vector<15x1x128xf32> to vector<15x128xf32>
    %106 = vector.shape_cast %105 : vector<15x128xf32> to vector<15x1x128xf32>
    %107 = tpu.concatenate %49, %52, %55, %58, %61, %64, %67, %70, %73, %76, %79, %82, %85, %88, %91, %94 in 1 : vector<15x1x128xf32>, vector<15x1x128xf32>, vector<15x1x128xf32>, vector<15x1x128xf32>, vector<15x1x128xf32>, vector<15x1x128xf32>, vector<15x1x128xf32>, vector<15x1x128xf32>, vector<15x1x128xf32>, vector<15x1x128xf32>, vector<15x1x128xf32>, vector<15x1x128xf32>, vector<15x1x128xf32>, vector<15x1x128xf32>, vector<15x1x128xf32>, vector<15x1x128xf32> -> vector<15x16x128xf32>
    %108 = tpu.concatenate %97, %100, %103, %106 in 1 : vector<15x1x128xf32>, vector<15x1x128xf32>, vector<15x1x128xf32>, vector<15x1x128xf32> -> vector<15x4x128xf32>
    %109 = tpu.concatenate %107, %108 in 1 : vector<15x16x128xf32>, vector<15x4x128xf32> -> vector<15x20x128xf32>
    %110 = vector.extract_strided_slice %0 {offsets = [0, 0, 0], sizes = [2, 20, 128], strides = [1, 1, 1]} : vector<16x20x128xf32> to vector<2x20x128xf32>
    %cst_36 = arith.constant dense<0xFF800000> : vector<20x128xf32>
    %111 = vector.multi_reduction <maximumf>, %110, %cst_36 [0] : vector<2x20x128xf32> to vector<20x128xf32>
    %112 = vector.shape_cast %111 : vector<20x128xf32> to vector<1x20x128xf32>
    %113 = vector.extract_strided_slice %0 {offsets = [2, 0, 0], sizes = [2, 20, 128], strides = [1, 1, 1]} : vector<16x20x128xf32> to vector<2x20x128xf32>
    %cst_37 = arith.constant dense<0xFF800000> : vector<20x128xf32>
    %114 = vector.multi_reduction <maximumf>, %113, %cst_37 [0] : vector<2x20x128xf32> to vector<20x128xf32>
    %115 = vector.shape_cast %114 : vector<20x128xf32> to vector<1x20x128xf32>
    %116 = vector.extract_strided_slice %0 {offsets = [4, 0, 0], sizes = [2, 20, 128], strides = [1, 1, 1]} : vector<16x20x128xf32> to vector<2x20x128xf32>
    %cst_38 = arith.constant dense<0xFF800000> : vector<20x128xf32>
    %117 = vector.multi_reduction <maximumf>, %116, %cst_38 [0] : vector<2x20x128xf32> to vector<20x128xf32>
    %118 = vector.shape_cast %117 : vector<20x128xf32> to vector<1x20x128xf32>
    %119 = vector.extract_strided_slice %0 {offsets = [6, 0, 0], sizes = [2, 20, 128], strides = [1, 1, 1]} : vector<16x20x128xf32> to vector<2x20x128xf32>
    %cst_39 = arith.constant dense<0xFF800000> : vector<20x128xf32>
    %120 = vector.multi_reduction <maximumf>, %119, %cst_39 [0] : vector<2x20x128xf32> to vector<20x128xf32>
    %121 = vector.shape_cast %120 : vector<20x128xf32> to vector<1x20x128xf32>
    %122 = vector.extract_strided_slice %0 {offsets = [8, 0, 0], sizes = [2, 20, 128], strides = [1, 1, 1]} : vector<16x20x128xf32> to vector<2x20x128xf32>
    %cst_40 = arith.constant dense<0xFF800000> : vector<20x128xf32>
    %123 = vector.multi_reduction <maximumf>, %122, %cst_40 [0] : vector<2x20x128xf32> to vector<20x128xf32>
    %124 = vector.shape_cast %123 : vector<20x128xf32> to vector<1x20x128xf32>
    %125 = vector.extract_strided_slice %0 {offsets = [10, 0, 0], sizes = [2, 20, 128], strides = [1, 1, 1]} : vector<16x20x128xf32> to vector<2x20x128xf32>
    %cst_41 = arith.constant dense<0xFF800000> : vector<20x128xf32>
    %126 = vector.multi_reduction <maximumf>, %125, %cst_41 [0] : vector<2x20x128xf32> to vector<20x128xf32>
    %127 = vector.shape_cast %126 : vector<20x128xf32> to vector<1x20x128xf32>
    %128 = vector.extract_strided_slice %0 {offsets = [12, 0, 0], sizes = [2, 20, 128], strides = [1, 1, 1]} : vector<16x20x128xf32> to vector<2x20x128xf32>
    %cst_42 = arith.constant dense<0xFF800000> : vector<20x128xf32>
    %129 = vector.multi_reduction <maximumf>, %128, %cst_42 [0] : vector<2x20x128xf32> to vector<20x128xf32>
    %130 = vector.shape_cast %129 : vector<20x128xf32> to vector<1x20x128xf32>
    %131 = vector.extract_strided_slice %0 {offsets = [14, 0, 0], sizes = [2, 20, 128], strides = [1, 1, 1]} : vector<16x20x128xf32> to vector<2x20x128xf32>
    %cst_43 = arith.constant dense<0xFF800000> : vector<20x128xf32>
    %132 = vector.multi_reduction <maximumf>, %131, %cst_43 [0] : vector<2x20x128xf32> to vector<20x128xf32>
    %133 = vector.shape_cast %132 : vector<20x128xf32> to vector<1x20x128xf32>
    %134 = tpu.concatenate %112, %115, %118, %121, %124, %127, %130, %133 in 0 : vector<1x20x128xf32>, vector<1x20x128xf32>, vector<1x20x128xf32>, vector<1x20x128xf32>, vector<1x20x128xf32>, vector<1x20x128xf32>, vector<1x20x128xf32>, vector<1x20x128xf32> -> vector<8x20x128xf32>
    %135 = vector.extract_strided_slice %134 {offsets = [0, 0, 0], sizes = [8, 2, 128], strides = [1, 1, 1]} : vector<8x20x128xf32> to vector<8x2x128xf32>
    %cst_44 = arith.constant dense<0xFF800000> : vector<8x128xf32>
    %136 = vector.multi_reduction <maximumf>, %135, %cst_44 [1] : vector<8x2x128xf32> to vector<8x128xf32>
    %137 = vector.shape_cast %136 : vector<8x128xf32> to vector<8x1x128xf32>
    %138 = vector.extract_strided_slice %134 {offsets = [0, 2, 0], sizes = [8, 2, 128], strides = [1, 1, 1]} : vector<8x20x128xf32> to vector<8x2x128xf32>
    %cst_45 = arith.constant dense<0xFF800000> : vector<8x128xf32>
    %139 = vector.multi_reduction <maximumf>, %138, %cst_45 [1] : vector<8x2x128xf32> to vector<8x128xf32>
    %140 = vector.shape_cast %139 : vector<8x128xf32> to vector<8x1x128xf32>
    %141 = vector.extract_strided_slice %134 {offsets = [0, 4, 0], sizes = [8, 2, 128], strides = [1, 1, 1]} : vector<8x20x128xf32> to vector<8x2x128xf32>
    %cst_46 = arith.constant dense<0xFF800000> : vector<8x128xf32>
    %142 = vector.multi_reduction <maximumf>, %141, %cst_46 [1] : vector<8x2x128xf32> to vector<8x128xf32>
    %143 = vector.shape_cast %142 : vector<8x128xf32> to vector<8x1x128xf32>
    %144 = vector.extract_strided_slice %134 {offsets = [0, 6, 0], sizes = [8, 2, 128], strides = [1, 1, 1]} : vector<8x20x128xf32> to vector<8x2x128xf32>
    %cst_47 = arith.constant dense<0xFF800000> : vector<8x128xf32>
    %145 = vector.multi_reduction <maximumf>, %144, %cst_47 [1] : vector<8x2x128xf32> to vector<8x128xf32>
    %146 = vector.shape_cast %145 : vector<8x128xf32> to vector<8x1x128xf32>
    %147 = vector.extract_strided_slice %134 {offsets = [0, 8, 0], sizes = [8, 2, 128], strides = [1, 1, 1]} : vector<8x20x128xf32> to vector<8x2x128xf32>
    %cst_48 = arith.constant dense<0xFF800000> : vector<8x128xf32>
    %148 = vector.multi_reduction <maximumf>, %147, %cst_48 [1] : vector<8x2x128xf32> to vector<8x128xf32>
    %149 = vector.shape_cast %148 : vector<8x128xf32> to vector<8x1x128xf32>
    %150 = vector.extract_strided_slice %134 {offsets = [0, 10, 0], sizes = [8, 2, 128], strides = [1, 1, 1]} : vector<8x20x128xf32> to vector<8x2x128xf32>
    %cst_49 = arith.constant dense<0xFF800000> : vector<8x128xf32>
    %151 = vector.multi_reduction <maximumf>, %150, %cst_49 [1] : vector<8x2x128xf32> to vector<8x128xf32>
    %152 = vector.shape_cast %151 : vector<8x128xf32> to vector<8x1x128xf32>
    %153 = vector.extract_strided_slice %134 {offsets = [0, 12, 0], sizes = [8, 2, 128], strides = [1, 1, 1]} : vector<8x20x128xf32> to vector<8x2x128xf32>
    %cst_50 = arith.constant dense<0xFF800000> : vector<8x128xf32>
    %154 = vector.multi_reduction <maximumf>, %153, %cst_50 [1] : vector<8x2x128xf32> to vector<8x128xf32>
    %155 = vector.shape_cast %154 : vector<8x128xf32> to vector<8x1x128xf32>
    %156 = vector.extract_strided_slice %134 {offsets = [0, 14, 0], sizes = [8, 2, 128], strides = [1, 1, 1]} : vector<8x20x128xf32> to vector<8x2x128xf32>
    %cst_51 = arith.constant dense<0xFF800000> : vector<8x128xf32>
    %157 = vector.multi_reduction <maximumf>, %156, %cst_51 [1] : vector<8x2x128xf32> to vector<8x128xf32>
    %158 = vector.shape_cast %157 : vector<8x128xf32> to vector<8x1x128xf32>
    %159 = vector.extract_strided_slice %134 {offsets = [0, 16, 0], sizes = [8, 2, 128], strides = [1, 1, 1]} : vector<8x20x128xf32> to vector<8x2x128xf32>
    %cst_52 = arith.constant dense<0xFF800000> : vector<8x128xf32>
    %160 = vector.multi_reduction <maximumf>, %159, %cst_52 [1] : vector<8x2x128xf32> to vector<8x128xf32>
    %161 = vector.shape_cast %160 : vector<8x128xf32> to vector<8x1x128xf32>
    %162 = vector.extract_strided_slice %134 {offsets = [0, 18, 0], sizes = [8, 2, 128], strides = [1, 1, 1]} : vector<8x20x128xf32> to vector<8x2x128xf32>
    %cst_53 = arith.constant dense<0xFF800000> : vector<8x128xf32>
    %163 = vector.multi_reduction <maximumf>, %162, %cst_53 [1] : vector<8x2x128xf32> to vector<8x128xf32>
    %164 = vector.shape_cast %163 : vector<8x128xf32> to vector<8x1x128xf32>
    %165 = tpu.concatenate %137, %140, %143, %146, %149, %152, %155, %158, %161, %164 in 1 : vector<8x1x128xf32>, vector<8x1x128xf32>, vector<8x1x128xf32>, vector<8x1x128xf32>, vector<8x1x128xf32>, vector<8x1x128xf32>, vector<8x1x128xf32>, vector<8x1x128xf32>, vector<8x1x128xf32>, vector<8x1x128xf32> -> vector<8x10x128xf32>
    %166 = vector.extract_strided_slice %165 {offsets = [0, 0, 0], sizes = [2, 10, 128], strides = [1, 1, 1]} : vector<8x10x128xf32> to vector<2x10x128xf32>
    %cst_54 = arith.constant dense<0xFF800000> : vector<10x128xf32>
    %167 = vector.multi_reduction <maximumf>, %166, %cst_54 [0] : vector<2x10x128xf32> to vector<10x128xf32>
    %168 = vector.shape_cast %167 : vector<10x128xf32> to vector<1x10x128xf32>
    %169 = vector.extract_strided_slice %165 {offsets = [2, 0, 0], sizes = [2, 10, 128], strides = [1, 1, 1]} : vector<8x10x128xf32> to vector<2x10x128xf32>
    %cst_55 = arith.constant dense<0xFF800000> : vector<10x128xf32>
    %170 = vector.multi_reduction <maximumf>, %169, %cst_55 [0] : vector<2x10x128xf32> to vector<10x128xf32>
    %171 = vector.shape_cast %170 : vector<10x128xf32> to vector<1x10x128xf32>
    %172 = vector.extract_strided_slice %165 {offsets = [4, 0, 0], sizes = [2, 10, 128], strides = [1, 1, 1]} : vector<8x10x128xf32> to vector<2x10x128xf32>
    %cst_56 = arith.constant dense<0xFF800000> : vector<10x128xf32>
    %173 = vector.multi_reduction <maximumf>, %172, %cst_56 [0] : vector<2x10x128xf32> to vector<10x128xf32>
    %174 = vector.shape_cast %173 : vector<10x128xf32> to vector<1x10x128xf32>
    %175 = vector.extract_strided_slice %165 {offsets = [6, 0, 0], sizes = [2, 10, 128], strides = [1, 1, 1]} : vector<8x10x128xf32> to vector<2x10x128xf32>
    %cst_57 = arith.constant dense<0xFF800000> : vector<10x128xf32>
    %176 = vector.multi_reduction <maximumf>, %175, %cst_57 [0] : vector<2x10x128xf32> to vector<10x128xf32>
    %177 = vector.shape_cast %176 : vector<10x128xf32> to vector<1x10x128xf32>
    %178 = tpu.concatenate %168, %171, %174, %177 in 0 : vector<1x10x128xf32>, vector<1x10x128xf32>, vector<1x10x128xf32>, vector<1x10x128xf32> -> vector<4x10x128xf32>
    %179 = vector.extract_strided_slice %178 {offsets = [0, 0, 0], sizes = [4, 2, 128], strides = [1, 1, 1]} : vector<4x10x128xf32> to vector<4x2x128xf32>
    %cst_58 = arith.constant dense<0xFF800000> : vector<4x128xf32>
    %180 = vector.multi_reduction <maximumf>, %179, %cst_58 [1] : vector<4x2x128xf32> to vector<4x128xf32>
    %181 = vector.shape_cast %180 : vector<4x128xf32> to vector<4x1x128xf32>
    %182 = vector.extract_strided_slice %178 {offsets = [0, 2, 0], sizes = [4, 2, 128], strides = [1, 1, 1]} : vector<4x10x128xf32> to vector<4x2x128xf32>
    %cst_59 = arith.constant dense<0xFF800000> : vector<4x128xf32>
    %183 = vector.multi_reduction <maximumf>, %182, %cst_59 [1] : vector<4x2x128xf32> to vector<4x128xf32>
    %184 = vector.shape_cast %183 : vector<4x128xf32> to vector<4x1x128xf32>
    %185 = vector.extract_strided_slice %178 {offsets = [0, 4, 0], sizes = [4, 2, 128], strides = [1, 1, 1]} : vector<4x10x128xf32> to vector<4x2x128xf32>
    %cst_60 = arith.constant dense<0xFF800000> : vector<4x128xf32>
    %186 = vector.multi_reduction <maximumf>, %185, %cst_60 [1] : vector<4x2x128xf32> to vector<4x128xf32>
    %187 = vector.shape_cast %186 : vector<4x128xf32> to vector<4x1x128xf32>
    %188 = vector.extract_strided_slice %178 {offsets = [0, 6, 0], sizes = [4, 2, 128], strides = [1, 1, 1]} : vector<4x10x128xf32> to vector<4x2x128xf32>
    %cst_61 = arith.constant dense<0xFF800000> : vector<4x128xf32>
    %189 = vector.multi_reduction <maximumf>, %188, %cst_61 [1] : vector<4x2x128xf32> to vector<4x128xf32>
    %190 = vector.shape_cast %189 : vector<4x128xf32> to vector<4x1x128xf32>
    %191 = vector.extract_strided_slice %178 {offsets = [0, 8, 0], sizes = [4, 2, 128], strides = [1, 1, 1]} : vector<4x10x128xf32> to vector<4x2x128xf32>
    %cst_62 = arith.constant dense<0xFF800000> : vector<4x128xf32>
    %192 = vector.multi_reduction <maximumf>, %191, %cst_62 [1] : vector<4x2x128xf32> to vector<4x128xf32>
    %193 = vector.shape_cast %192 : vector<4x128xf32> to vector<4x1x128xf32>
    %194 = tpu.concatenate %181, %184, %187, %190, %193 in 1 : vector<4x1x128xf32>, vector<4x1x128xf32>, vector<4x1x128xf32>, vector<4x1x128xf32>, vector<4x1x128xf32> -> vector<4x5x128xf32>
    %cst_63 = arith.constant dense<0xFF800000> : vector<5x128xf32>
    %195 = vector.multi_reduction <maximumf>, %194, %cst_63 [0] : vector<4x5x128xf32> to vector<5x128xf32>
    %196 = vector.shape_cast %195 : vector<5x128xf32> to vector<1x5x128xf32>
    %cst_64 = arith.constant dense<0xFF800000> : vector<1x128xf32>
    %197 = vector.multi_reduction <maximumf>, %196, %cst_64 [1] : vector<1x5x128xf32> to vector<1x128xf32>
    %198 = vector.shape_cast %197 : vector<1x128xf32> to vector<1x1x128xf32>
    %199 = vector.shape_cast %198 : vector<1x1x128xf32> to vector<1x128xf32>
    %c0_65 = arith.constant 0 : index
    %c0_66 = arith.constant 0 : index
    %200 = vector.load %arg2[%c0_65, %c0_66] : memref<401x128xf32, #tpu.memory_space<vmem>>, vector<1x128xf32>
    tpu.vector_store %arg2[%c0_65, %c0_66], %199 {strides = array<i32>} : memref<401x128xf32, #tpu.memory_space<vmem>>, vector<1x128xf32>,
    %201 = vector.extract_strided_slice %194 {offsets = [0, 0, 0], sizes = [1, 5, 128], strides = [1, 1, 1]} : vector<4x5x128xf32> to vector<1x5x128xf32>
    %202 = vector.shape_cast %201 : vector<1x5x128xf32> to vector<5x128xf32>
    %c1 = arith.constant 1 : index
    %c0_67 = arith.constant 0 : index
    %203 = vector.load %arg2[%c1, %c0_67] : memref<401x128xf32, #tpu.memory_space<vmem>>, vector<5x128xf32>
    tpu.vector_store %arg2[%c1, %c0_67], %202 {strides = array<i32>} : memref<401x128xf32, #tpu.memory_space<vmem>>, vector<5x128xf32>,
    %204 = vector.extract_strided_slice %194 {offsets = [1, 0, 0], sizes = [1, 5, 128], strides = [1, 1, 1]} : vector<4x5x128xf32> to vector<1x5x128xf32>
    %205 = vector.shape_cast %204 : vector<1x5x128xf32> to vector<5x128xf32>
    %c6 = arith.constant 6 : index
    %c0_68 = arith.constant 0 : index
    %206 = vector.load %arg2[%c6, %c0_68] : memref<401x128xf32, #tpu.memory_space<vmem>>, vector<5x128xf32>
    tpu.vector_store %arg2[%c6, %c0_68], %205 {strides = array<i32>} : memref<401x128xf32, #tpu.memory_space<vmem>>, vector<5x128xf32>,
    %207 = vector.extract_strided_slice %194 {offsets = [2, 0, 0], sizes = [1, 5, 128], strides = [1, 1, 1]} : vector<4x5x128xf32> to vector<1x5x128xf32>
    %208 = vector.shape_cast %207 : vector<1x5x128xf32> to vector<5x128xf32>
    %c11 = arith.constant 11 : index
    %c0_69 = arith.constant 0 : index
    %209 = vector.load %arg2[%c11, %c0_69] : memref<401x128xf32, #tpu.memory_space<vmem>>, vector<5x128xf32>
    tpu.vector_store %arg2[%c11, %c0_69], %208 {strides = array<i32>} : memref<401x128xf32, #tpu.memory_space<vmem>>, vector<5x128xf32>,
    %210 = vector.extract_strided_slice %194 {offsets = [3, 0, 0], sizes = [1, 5, 128], strides = [1, 1, 1]} : vector<4x5x128xf32> to vector<1x5x128xf32>
    %211 = vector.shape_cast %210 : vector<1x5x128xf32> to vector<5x128xf32>
    %c16 = arith.constant 16 : index
    %c0_70 = arith.constant 0 : index
    %212 = vector.load %arg2[%c16, %c0_70] : memref<401x128xf32, #tpu.memory_space<vmem>>, vector<5x128xf32>
    tpu.vector_store %arg2[%c16, %c0_70], %211 {strides = array<i32>} : memref<401x128xf32, #tpu.memory_space<vmem>>, vector<5x128xf32>,
    %213 = vector.extract_strided_slice %165 {offsets = [0, 0, 0], sizes = [1, 10, 128], strides = [1, 1, 1]} : vector<8x10x128xf32> to vector<1x10x128xf32>
    %214 = vector.shape_cast %213 : vector<1x10x128xf32> to vector<10x128xf32>
    %c21 = arith.constant 21 : index
    %c0_71 = arith.constant 0 : index
    %215 = vector.load %arg2[%c21, %c0_71] : memref<401x128xf32, #tpu.memory_space<vmem>>, vector<10x128xf32>
    tpu.vector_store %arg2[%c21, %c0_71], %214 {strides = array<i32>} : memref<401x128xf32, #tpu.memory_space<vmem>>, vector<10x128xf32>,
    %216 = vector.extract_strided_slice %165 {offsets = [1, 0, 0], sizes = [1, 10, 128], strides = [1, 1, 1]} : vector<8x10x128xf32> to vector<1x10x128xf32>
    %217 = vector.shape_cast %216 : vector<1x10x128xf32> to vector<10x128xf32>
    %c31 = arith.constant 31 : index
    %c0_72 = arith.constant 0 : index
    %218 = vector.load %arg2[%c31, %c0_72] : memref<401x128xf32, #tpu.memory_space<vmem>>, vector<10x128xf32>
    tpu.vector_store %arg2[%c31, %c0_72], %217 {strides = array<i32>} : memref<401x128xf32, #tpu.memory_space<vmem>>, vector<10x128xf32>,
    %219 = vector.extract_strided_slice %165 {offsets = [2, 0, 0], sizes = [1, 10, 128], strides = [1, 1, 1]} : vector<8x10x128xf32> to vector<1x10x128xf32>
    %220 = vector.shape_cast %219 : vector<1x10x128xf32> to vector<10x128xf32>
    %c41 = arith.constant 41 : index
    %c0_73 = arith.constant 0 : index
    %221 = vector.load %arg2[%c41, %c0_73] : memref<401x128xf32, #tpu.memory_space<vmem>>, vector<10x128xf32>
    tpu.vector_store %arg2[%c41, %c0_73], %220 {strides = array<i32>} : memref<401x128xf32, #tpu.memory_space<vmem>>, vector<10x128xf32>,
    %222 = vector.extract_strided_slice %165 {offsets = [3, 0, 0], sizes = [1, 10, 128], strides = [1, 1, 1]} : vector<8x10x128xf32> to vector<1x10x128xf32>
    %223 = vector.shape_cast %222 : vector<1x10x128xf32> to vector<10x128xf32>
    %c51 = arith.constant 51 : index
    %c0_74 = arith.constant 0 : index
    %224 = vector.load %arg2[%c51, %c0_74] : memref<401x128xf32, #tpu.memory_space<vmem>>, vector<10x128xf32>
    tpu.vector_store %arg2[%c51, %c0_74], %223 {strides = array<i32>} : memref<401x128xf32, #tpu.memory_space<vmem>>, vector<10x128xf32>,
    %225 = vector.extract_strided_slice %165 {offsets = [4, 0, 0], sizes = [1, 10, 128], strides = [1, 1, 1]} : vector<8x10x128xf32> to vector<1x10x128xf32>
    %226 = vector.shape_cast %225 : vector<1x10x128xf32> to vector<10x128xf32>
    %c61 = arith.constant 61 : index
    %c0_75 = arith.constant 0 : index
    %227 = vector.load %arg2[%c61, %c0_75] : memref<401x128xf32, #tpu.memory_space<vmem>>, vector<10x128xf32>
    tpu.vector_store %arg2[%c61, %c0_75], %226 {strides = array<i32>} : memref<401x128xf32, #tpu.memory_space<vmem>>, vector<10x128xf32>,
    %228 = vector.extract_strided_slice %165 {offsets = [5, 0, 0], sizes = [1, 10, 128], strides = [1, 1, 1]} : vector<8x10x128xf32> to vector<1x10x128xf32>
    %229 = vector.shape_cast %228 : vector<1x10x128xf32> to vector<10x128xf32>
    %c71 = arith.constant 71 : index
    %c0_76 = arith.constant 0 : index
    %230 = vector.load %arg2[%c71, %c0_76] : memref<401x128xf32, #tpu.memory_space<vmem>>, vector<10x128xf32>
    tpu.vector_store %arg2[%c71, %c0_76], %229 {strides = array<i32>} : memref<401x128xf32, #tpu.memory_space<vmem>>, vector<10x128xf32>,
    %231 = vector.extract_strided_slice %165 {offsets = [6, 0, 0], sizes = [1, 10, 128], strides = [1, 1, 1]} : vector<8x10x128xf32> to vector<1x10x128xf32>
    %232 = vector.shape_cast %231 : vector<1x10x128xf32> to vector<10x128xf32>
    %c81 = arith.constant 81 : index
    %c0_77 = arith.constant 0 : index
    %233 = vector.load %arg2[%c81, %c0_77] : memref<401x128xf32, #tpu.memory_space<vmem>>, vector<10x128xf32>
    tpu.vector_store %arg2[%c81, %c0_77], %232 {strides = array<i32>} : memref<401x128xf32, #tpu.memory_space<vmem>>, vector<10x128xf32>,
    %234 = vector.extract_strided_slice %165 {offsets = [7, 0, 0], sizes = [1, 10, 128], strides = [1, 1, 1]} : vector<8x10x128xf32> to vector<1x10x128xf32>
    %235 = vector.shape_cast %234 : vector<1x10x128xf32> to vector<10x128xf32>
    %c91 = arith.constant 91 : index
    %c0_78 = arith.constant 0 : index
    %236 = vector.load %arg2[%c91, %c0_78] : memref<401x128xf32, #tpu.memory_space<vmem>>, vector<10x128xf32>
    tpu.vector_store %arg2[%c91, %c0_78], %235 {strides = array<i32>} : memref<401x128xf32, #tpu.memory_space<vmem>>, vector<10x128xf32>,
    %237 = vector.extract_strided_slice %109 {offsets = [0, 0, 0], sizes = [1, 20, 128], strides = [1, 1, 1]} : vector<15x20x128xf32> to vector<1x20x128xf32>
    %238 = vector.shape_cast %237 : vector<1x20x128xf32> to vector<20x128xf32>
    %c101 = arith.constant 101 : index
    %c0_79 = arith.constant 0 : index
    %239 = vector.load %arg2[%c101, %c0_79] : memref<401x128xf32, #tpu.memory_space<vmem>>, vector<20x128xf32>
    tpu.vector_store %arg2[%c101, %c0_79], %238 {strides = array<i32>} : memref<401x128xf32, #tpu.memory_space<vmem>>, vector<20x128xf32>,
    %240 = vector.extract_strided_slice %109 {offsets = [1, 0, 0], sizes = [1, 20, 128], strides = [1, 1, 1]} : vector<15x20x128xf32> to vector<1x20x128xf32>
    %241 = vector.shape_cast %240 : vector<1x20x128xf32> to vector<20x128xf32>
    %c121 = arith.constant 121 : index
    %c0_80 = arith.constant 0 : index
    %242 = vector.load %arg2[%c121, %c0_80] : memref<401x128xf32, #tpu.memory_space<vmem>>, vector<20x128xf32>
    tpu.vector_store %arg2[%c121, %c0_80], %241 {strides = array<i32>} : memref<401x128xf32, #tpu.memory_space<vmem>>, vector<20x128xf32>,
    %243 = vector.extract_strided_slice %109 {offsets = [2, 0, 0], sizes = [1, 20, 128], strides = [1, 1, 1]} : vector<15x20x128xf32> to vector<1x20x128xf32>
    %244 = vector.shape_cast %243 : vector<1x20x128xf32> to vector<20x128xf32>
    %c141 = arith.constant 141 : index
    %c0_81 = arith.constant 0 : index
    %245 = vector.load %arg2[%c141, %c0_81] : memref<401x128xf32, #tpu.memory_space<vmem>>, vector<20x128xf32>
    tpu.vector_store %arg2[%c141, %c0_81], %244 {strides = array<i32>} : memref<401x128xf32, #tpu.memory_space<vmem>>, vector<20x128xf32>,
    %246 = vector.extract_strided_slice %109 {offsets = [3, 0, 0], sizes = [1, 20, 128], strides = [1, 1, 1]} : vector<15x20x128xf32> to vector<1x20x128xf32>
    %247 = vector.shape_cast %246 : vector<1x20x128xf32> to vector<20x128xf32>
    %c161 = arith.constant 161 : index
    %c0_82 = arith.constant 0 : index
    %248 = vector.load %arg2[%c161, %c0_82] : memref<401x128xf32, #tpu.memory_space<vmem>>, vector<20x128xf32>
    tpu.vector_store %arg2[%c161, %c0_82], %247 {strides = array<i32>} : memref<401x128xf32, #tpu.memory_space<vmem>>, vector<20x128xf32>,
    %249 = vector.extract_strided_slice %109 {offsets = [4, 0, 0], sizes = [1, 20, 128], strides = [1, 1, 1]} : vector<15x20x128xf32> to vector<1x20x128xf32>
    %250 = vector.shape_cast %249 : vector<1x20x128xf32> to vector<20x128xf32>
    %c181 = arith.constant 181 : index
    %c0_83 = arith.constant 0 : index
    %251 = vector.load %arg2[%c181, %c0_83] : memref<401x128xf32, #tpu.memory_space<vmem>>, vector<20x128xf32>
    tpu.vector_store %arg2[%c181, %c0_83], %250 {strides = array<i32>} : memref<401x128xf32, #tpu.memory_space<vmem>>, vector<20x128xf32>,
    %252 = vector.extract_strided_slice %109 {offsets = [5, 0, 0], sizes = [1, 20, 128], strides = [1, 1, 1]} : vector<15x20x128xf32> to vector<1x20x128xf32>
    %253 = vector.shape_cast %252 : vector<1x20x128xf32> to vector<20x128xf32>
    %c201 = arith.constant 201 : index
    %c0_84 = arith.constant 0 : index
    %254 = vector.load %arg2[%c201, %c0_84] : memref<401x128xf32, #tpu.memory_space<vmem>>, vector<20x128xf32>
    tpu.vector_store %arg2[%c201, %c0_84], %253 {strides = array<i32>} : memref<401x128xf32, #tpu.memory_space<vmem>>, vector<20x128xf32>,
    %255 = vector.extract_strided_slice %109 {offsets = [6, 0, 0], sizes = [1, 20, 128], strides = [1, 1, 1]} : vector<15x20x128xf32> to vector<1x20x128xf32>
    %256 = vector.shape_cast %255 : vector<1x20x128xf32> to vector<20x128xf32>
    %c221 = arith.constant 221 : index
    %c0_85 = arith.constant 0 : index
    %257 = vector.load %arg2[%c221, %c0_85] : memref<401x128xf32, #tpu.memory_space<vmem>>, vector<20x128xf32>
    tpu.vector_store %arg2[%c221, %c0_85], %256 {strides = array<i32>} : memref<401x128xf32, #tpu.memory_space<vmem>>, vector<20x128xf32>,
    %258 = vector.extract_strided_slice %109 {offsets = [7, 0, 0], sizes = [1, 20, 128], strides = [1, 1, 1]} : vector<15x20x128xf32> to vector<1x20x128xf32>
    %259 = vector.shape_cast %258 : vector<1x20x128xf32> to vector<20x128xf32>
    %c241 = arith.constant 241 : index
    %c0_86 = arith.constant 0 : index
    %260 = vector.load %arg2[%c241, %c0_86] : memref<401x128xf32, #tpu.memory_space<vmem>>, vector<20x128xf32>
    tpu.vector_store %arg2[%c241, %c0_86], %259 {strides = array<i32>} : memref<401x128xf32, #tpu.memory_space<vmem>>, vector<20x128xf32>,
    %261 = vector.extract_strided_slice %109 {offsets = [8, 0, 0], sizes = [1, 20, 128], strides = [1, 1, 1]} : vector<15x20x128xf32> to vector<1x20x128xf32>
    %262 = vector.shape_cast %261 : vector<1x20x128xf32> to vector<20x128xf32>
    %c261 = arith.constant 261 : index
    %c0_87 = arith.constant 0 : index
    %263 = vector.load %arg2[%c261, %c0_87] : memref<401x128xf32, #tpu.memory_space<vmem>>, vector<20x128xf32>
    tpu.vector_store %arg2[%c261, %c0_87], %262 {strides = array<i32>} : memref<401x128xf32, #tpu.memory_space<vmem>>, vector<20x128xf32>,
    %264 = vector.extract_strided_slice %109 {offsets = [9, 0, 0], sizes = [1, 20, 128], strides = [1, 1, 1]} : vector<15x20x128xf32> to vector<1x20x128xf32>
    %265 = vector.shape_cast %264 : vector<1x20x128xf32> to vector<20x128xf32>
    %c281 = arith.constant 281 : index
    %c0_88 = arith.constant 0 : index
    %266 = vector.load %arg2[%c281, %c0_88] : memref<401x128xf32, #tpu.memory_space<vmem>>, vector<20x128xf32>
    tpu.vector_store %arg2[%c281, %c0_88], %265 {strides = array<i32>} : memref<401x128xf32, #tpu.memory_space<vmem>>, vector<20x128xf32>,
    %267 = vector.extract_strided_slice %109 {offsets = [10, 0, 0], sizes = [1, 20, 128], strides = [1, 1, 1]} : vector<15x20x128xf32> to vector<1x20x128xf32>
    %268 = vector.shape_cast %267 : vector<1x20x128xf32> to vector<20x128xf32>
    %c301 = arith.constant 301 : index
    %c0_89 = arith.constant 0 : index
    %269 = vector.load %arg2[%c301, %c0_89] : memref<401x128xf32, #tpu.memory_space<vmem>>, vector<20x128xf32>
    tpu.vector_store %arg2[%c301, %c0_89], %268 {strides = array<i32>} : memref<401x128xf32, #tpu.memory_space<vmem>>, vector<20x128xf32>,
    %270 = vector.extract_strided_slice %109 {offsets = [11, 0, 0], sizes = [1, 20, 128], strides = [1, 1, 1]} : vector<15x20x128xf32> to vector<1x20x128xf32>
    %271 = vector.shape_cast %270 : vector<1x20x128xf32> to vector<20x128xf32>
    %c321 = arith.constant 321 : index
    %c0_90 = arith.constant 0 : index
    %272 = vector.load %arg2[%c321, %c0_90] : memref<401x128xf32, #tpu.memory_space<vmem>>, vector<20x128xf32>
    tpu.vector_store %arg2[%c321, %c0_90], %271 {strides = array<i32>} : memref<401x128xf32, #tpu.memory_space<vmem>>, vector<20x128xf32>,
    %273 = vector.extract_strided_slice %109 {offsets = [12, 0, 0], sizes = [1, 20, 128], strides = [1, 1, 1]} : vector<15x20x128xf32> to vector<1x20x128xf32>
    %274 = vector.shape_cast %273 : vector<1x20x128xf32> to vector<20x128xf32>
    %c341 = arith.constant 341 : index
    %c0_91 = arith.constant 0 : index
    %275 = vector.load %arg2[%c341, %c0_91] : memref<401x128xf32, #tpu.memory_space<vmem>>, vector<20x128xf32>
    tpu.vector_store %arg2[%c341, %c0_91], %274 {strides = array<i32>} : memref<401x128xf32, #tpu.memory_space<vmem>>, vector<20x128xf32>,
    %276 = vector.extract_strided_slice %109 {offsets = [13, 0, 0], sizes = [1, 20, 128], strides = [1, 1, 1]} : vector<15x20x128xf32> to vector<1x20x128xf32>
    %277 = vector.shape_cast %276 : vector<1x20x128xf32> to vector<20x128xf32>
    %c361 = arith.constant 361 : index
    %c0_92 = arith.constant 0 : index
    %278 = vector.load %arg2[%c361, %c0_92] : memref<401x128xf32, #tpu.memory_space<vmem>>, vector<20x128xf32>
    tpu.vector_store %arg2[%c361, %c0_92], %277 {strides = array<i32>} : memref<401x128xf32, #tpu.memory_space<vmem>>, vector<20x128xf32>,
    %279 = vector.extract_strided_slice %109 {offsets = [14, 0, 0], sizes = [1, 20, 128], strides = [1, 1, 1]} : vector<15x20x128xf32> to vector<1x20x128xf32>
    %280 = vector.shape_cast %279 : vector<1x20x128xf32> to vector<20x128xf32>
    %c381 = arith.constant 381 : index
    %c0_93 = arith.constant 0 : index
    %281 = vector.load %arg2[%c381, %c0_93] : memref<401x128xf32, #tpu.memory_space<vmem>>, vector<20x128xf32>
    tpu.vector_store %arg2[%c381, %c0_93], %280 {strides = array<i32>} : memref<401x128xf32, #tpu.memory_space<vmem>>, vector<20x128xf32>,
    return
  }
  func.func @transform_0(%arg0: i32) -> (i32, i32, i32) {
    %c0_i32 = arith.constant 0 : i32
    %c0_i32_0 = arith.constant 0 : i32
    %c0_i32_1 = arith.constant 0 : i32
    return %c0_i32, %c0_i32_0, %arg0 : i32, i32, i32
  }
  func.func @transform_1(%arg0: i32) -> (i32, i32) {
    %c0_i32 = arith.constant 0 : i32
    %c0_i32_0 = arith.constant 0 : i32
    return %c0_i32, %arg0 : i32, i32
  }
}

</mosaic_0001>

<llo_original>
// kernel: tpu_custom_call.1
$region0: #{tpu_custom_call.1}
  #allocation0 [shape = 'u32[]', space=smem, size = 0x4, offset = 0x4, fixed_abs, tag = 'smem constant byte address 0x4 - core index']
  #allocation1 [shape = 'u32[144,128]{1,0:T(1,128)}', space=vmem, size = 0x12000, scoped, tag = 'internal scratch']
  %s0 = inlined_call_operand.vmem [shape: f32[16,20,256], index: 0, kind: input, shape index: {}]
  %s1 = inlined_call_operand.hbm [shape: f32[401,256], index: 1, kind: output, shape index: {}]
  %s2 = sld [smem:[#allocation0]]
  $region75: #{tpu_custom_call.1} parent=0
    _
  %s4 = ssub.s32 1, %s2
  %s5 = scalar_select 0, %s4, %s2
  $region1: #{tpu_custom_call.1} parent=0
    #allocation2 [shape = 'u8[393216]{0}', space=vmem, size = 0x60000, scoped, tag = 'input window, operand 0']
    #allocation3 [shape = 'u8[417792]{0}', space=vmem, size = 0x66000, scoped, tag = 'output window, operand 0']
    #allocation4 [shape = 's32[2]{0}', space=sflag, size = 0x8, scoped, tag = 'scoped memory for tpu_custom_call.1']
    %6 = vsyncpa [#allocation4], 0
    %s7 = scalar_lea.sflag [#allocation4], 1
    %8 = vsyncpa %s7, 0
    loop: start=0, step=1, limit=4
    $region2: #{tpu_custom_call.1} parent=1 // loop_pre_header
      _
    $region3: #{tpu_custom_call.1} parent=1 // loop_header
      %s10 = sphi 0, %s14
      %p11 = scmp.ge.s32.totalorder %s10, 4
      %s20 = sphi 0, %s22
      %s23 = sphi 0, %s20
      %s24 = sphi 0, %s23
      %s40 = sphi 0, %s24
      %s46 = sphi 0, %s48
      %s49 = sphi 0, %s46
      %s50 = sphi 0, %s49
      %s66 = sphi 0, %s50
    $region4: #{tpu_custom_call.1} parent=1 // loop_header_branch
      %13 = sbr.rel (%p11) target = $region8
    $region5: #{tpu_custom_call.1} parent=1 // loop_body
      %s15 = ssub.s32 %s10, 1
      %s16 = ssub.s32 %s10, 2
      %s17 = sadd.s32 %s10, 1
      %s18 = ssub.s32 %s10, %s17
      %p19 = scmp.eq.s32.totalorder %s18, 0
      %s21 = sadd.s32 %s20, 1
      %s22 = scalar_select %p19, %s20, %s21
      %p25 = pneg %p19
      %p26 = scmp.eq.s32.totalorder %s10, 1
      %p27 = por %p25, %p26
      %p28 = scmp.ne.s32.totalorder %s20, %s23
      %p29 = scmp.eq.s32.totalorder %s10, 0
      %p30 = por %p28, %p29
      %p31 = scmp.ne.s32.totalorder %s20, %s23
      %p32 = scmp.eq.s32.totalorder %s15, 1
      %p33 = por %p31, %p32
      %p34 = scmp.ne.s32.totalorder %s23, %s24
      %p35 = scmp.eq.s32.totalorder %s15, 0
      %p36 = por %p34, %p35
      %p37 = scmp.ne.s32.totalorder %s23, %s24
      %p38 = scmp.eq.s32.totalorder %s16, 1
      %p39 = por %p37, %p38
      %p41 = scmp.ne.s32.totalorder %s24, %s40
      %p42 = scmp.eq.s32.totalorder %s16, 0
      %p43 = por %p41, %p42
      %s44 = ssub.s32 %s10, %s17
      %p45 = scmp.eq.s32.totalorder %s44, 0
      %s47 = sadd.s32 %s46, 1
      %s48 = scalar_select %p45, %s46, %s47
      %p51 = pneg %p45
      %p52 = scmp.eq.s32.totalorder %s10, 1
      %p53 = por %p51, %p52
      %p54 = scmp.ne.s32.totalorder %s46, %s49
      %p55 = scmp.eq.s32.totalorder %s10, 0
      %p56 = por %p54, %p55
      %p57 = scmp.ne.s32.totalorder %s46, %s49
      %p58 = scmp.eq.s32.totalorder %s15, 1
      %p59 = por %p57, %p58
      %p60 = scmp.ne.s32.totalorder %s49, %s50
      %p61 = scmp.eq.s32.totalorder %s15, 0
      %p62 = por %p60, %p61
      %p63 = scmp.ne.s32.totalorder %s49, %s50
      %p64 = scmp.eq.s32.totalorder %s16, 1
      %p65 = por %p63, %p64
      %p67 = scmp.ne.s32.totalorder %s50, %s66
      %p68 = scmp.eq.s32.totalorder %s16, 0
      %p69 = por %p67, %p68
      %p70 = scmp.le.s32.totalorder 1, %s10
      %p71 = scmp.lt.s32.totalorder %s10, 3
      %p72 = pnand %p70, %p71
      %p73 = pneg %p72
      // Predicated region
      $region9: #{tpu_custom_call.1} parent=5 // pred_check
        _
      $region10: #{tpu_custom_call.1} parent=5 // pred_check_branch
        %75 = sbr.rel (%p72) target = $region12
      $region11: #{tpu_custom_call.1} parent=5 // pred_region
        %s76 = ssub.s32 %s10, 1
      $region12: #{tpu_custom_call.1} parent=5 // pred_fallthru
        _
      %p77 = scmp.lt.s32.totalorder %s10, 2
      // Predicated region
      $region13: #{tpu_custom_call.1} parent=5 // pred_check
        %p78 = pneg %p77
      $region14: #{tpu_custom_call.1} parent=5 // pred_check_branch
        %80 = sbr.rel (%p78) target = $region16
      $region15: #{tpu_custom_call.1} parent=5 // pred_region
        // Predicated region
        $region17: #{tpu_custom_call.1} parent=15 // pred_check
          %p81 = pneg %p30
        $region18: #{tpu_custom_call.1} parent=15 // pred_check_branch
          %83 = sbr.rel (%p81) target = $region20
        $region19: #{tpu_custom_call.1} parent=15 // pred_region
          %s84 = sand.u32 %s20, 1
          %s85 = sand.u32 %s20, 1
          %s86 = smul.addr %s85, 384
          %s87 = scalar_lea.vmem [#allocation2], %s86
          %s88 = smul.addr %s10, 8
          %s89 = scalar_lea.vmem %s0, %s88
          // Predicated region
          $region21: #{tpu_custom_call.1} parent=19 // pred_check
            _
          $region22: #{tpu_custom_call.1} parent=19 // pred_check_branch
            %91 = sbr.rel (0) target = $region24
          $region23: #{tpu_custom_call.1} parent=19 // pred_region
            // Predicated region
            $region25: #{tpu_custom_call.1} parent=23 // pred_check
              _
            $region26: #{tpu_custom_call.1} parent=23 // pred_check_branch
              %93 = sbr.rel (0) target = $region28
            $region27: #{tpu_custom_call.1} parent=23 // pred_region
              // Predicated region
              $region40: #{tpu_custom_call.1} parent=27 // pred_check
                _
              $region41: #{tpu_custom_call.1} parent=27 // pred_check_branch
                %202 = sbr.rel (0) target = $region43
              $region42: #{tpu_custom_call.1} parent=27 // pred_region
                loop: start=0, step=1, limit=1
                $region44: #{tpu_custom_call.1} parent=42 // loop_pre_header
                  _
                $region45: #{tpu_custom_call.1} parent=42 // loop_header
                  %s204 = sphi 0, %s208
                  %p205 = scmp.ge.s32.totalorder %s204, 1
                  %s209 = sphi %s89, %s89
                  %s210 = sphi %s87, %s87
                $region46: #{tpu_custom_call.1} parent=42 // loop_header_branch
                  %207 = sbr.rel (%p205) target = $region50
                $region47: #{tpu_custom_call.1} parent=42 // loop_body
                  %v211 = vld [vmem:[%s209] sm:$0xff]
                  %212 = vst [vmem:[%s210] sm:$0xff] %v211
                  %v213 = vld [vmem:[%s209 + $0x10] sm:$0xff]
                  %214 = vst [vmem:[%s210 + $0x8] sm:$0xff] %v213
                  %v215 = vld [vmem:[%s209 + $0x20] sm:$0xff]
                  %216 = vst [vmem:[%s210 + $0x10] sm:$0xff] %v215
                  %v217 = vld [vmem:[%s209 + $0x30] sm:$0xff]
                  %218 = vst [vmem:[%s210 + $0x18] sm:$0xff] %v217
                  %v219 = vld [vmem:[%s209 + $0x40] sm:$0xff]
                  %220 = vst [vmem:[%s210 + $0x20] sm:$0xff] %v219
                  %v221 = vld [vmem:[%s209 + $0x50] sm:$0xff]
                  %222 = vst [vmem:[%s210 + $0x28] sm:$0xff] %v221
                  %v223 = vld [vmem:[%s209 + $0x60] sm:$0xff]
                  %224 = vst [vmem:[%s210 + $0x30] sm:$0xff] %v223
                  %v225 = vld [vmem:[%s209 + $0x70] sm:$0xff]
                  %226 = vst [vmem:[%s210 + $0x38] sm:$0xff] %v225
                  %v227 = vld [vmem:[%s209 + $0x80] sm:$0xff]
                  %228 = vst [vmem:[%s210 + $0x40] sm:$0xff] %v227
                  %v229 = vld [vmem:[%s209 + $0x90] sm:$0xff]
                  %230 = vst [vmem:[%s210 + $0x48] sm:$0xff] %v229
                  %v231 = vld [vmem:[%s209 + $0xa0] sm:$0xff]
                  %232 = vst [vmem:[%s210 + $0x50] sm:$0xff] %v231
                  %v233 = vld [vmem:[%s209 + $0xb0] sm:$0xff]
                  %234 = vst [vmem:[%s210 + $0x58] sm:$0xff] %v233
                  %v235 = vld [vmem:[%s209 + $0xc0] sm:$0xff]
                  %236 = vst [vmem:[%s210 + $0x60] sm:$0xff] %v235
                  %v237 = vld [vmem:[%s209 + $0xd0] sm:$0xff]
                  %238 = vst [vmem:[%s210 + $0x68] sm:$0xff] %v237
                  %v239 = vld [vmem:[%s209 + $0xe0] sm:$0xff]
                  %240 = vst [vmem:[%s210 + $0x70] sm:$0xff] %v239
                  %v241 = vld [vmem:[%s209 + $0xf0] sm:$0xff]
                  %242 = vst [vmem:[%s210 + $0x78] sm:$0xff] %v241
                  %v243 = vld [vmem:[%s209 + $0x100] sm:$0xff]
                  %244 = vst [vmem:[%s210 + $0x80] sm:$0xff] %v243
                  %v245 = vld [vmem:[%s209 + $0x110] sm:$0xff]
                  %246 = vst [vmem:[%s210 + $0x88] sm:$0xff] %v245
                  %v247 = vld [vmem:[%s209 + $0x120] sm:$0xff]
                  %248 = vst [vmem:[%s210 + $0x90] sm:$0xff] %v247
                  %v249 = vld [vmem:[%s209 + $0x130] sm:$0xff]
                  %250 = vst [vmem:[%s210 + $0x98] sm:$0xff] %v249
                  %v251 = vld [vmem:[%s209 + $0x140] sm:$0xff]
                  %252 = vst [vmem:[%s210 + $0xa0] sm:$0xff] %v251
                  %v253 = vld [vmem:[%s209 + $0x150] sm:$0xff]
                  %254 = vst [vmem:[%s210 + $0xa8] sm:$0xff] %v253
                  %v255 = vld [vmem:[%s209 + $0x160] sm:$0xff]
                  %256 = vst [vmem:[%s210 + $0xb0] sm:$0xff] %v255
                  %v257 = vld [vmem:[%s209 + $0x170] sm:$0xff]
                  %258 = vst [vmem:[%s210 + $0xb8] sm:$0xff] %v257
                  %v259 = vld [vmem:[%s209 + $0x180] sm:$0xff]
                  %260 = vst [vmem:[%s210 + $0xc0] sm:$0xff] %v259
                  %v261 = vld [vmem:[%s209 + $0x190] sm:$0xff]
                  %262 = vst [vmem:[%s210 + $0xc8] sm:$0xff] %v261
                  %v263 = vld [vmem:[%s209 + $0x1a0] sm:$0xff]
                  %264 = vst [vmem:[%s210 + $0xd0] sm:$0xff] %v263
                  %v265 = vld [vmem:[%s209 + $0x1b0] sm:$0xff]
                  %266 = vst [vmem:[%s210 + $0xd8] sm:$0xff] %v265
                  %v267 = vld [vmem:[%s209 + $0x1c0] sm:$0xff]
                  %268 = vst [vmem:[%s210 + $0xe0] sm:$0xff] %v267
                  %v269 = vld [vmem:[%s209 + $0x1d0] sm:$0xff]
                  %270 = vst [vmem:[%s210 + $0xe8] sm:$0xff] %v269
                  %v271 = vld [vmem:[%s209 + $0x1e0] sm:$0xff]
                  %272 = vst [vmem:[%s210 + $0xf0] sm:$0xff] %v271
                  %v273 = vld [vmem:[%s209 + $0x1f0] sm:$0xff]
                  %274 = vst [vmem:[%s210 + $0xf8] sm:$0xff] %v273
                  %v275 = vld [vmem:[%s209 + $0x200] sm:$0xff]
                  %276 = vst [vmem:[%s210 + $0x100] sm:$0xff] %v275
                  %v277 = vld [vmem:[%s209 + $0x210] sm:$0xff]
                  %278 = vst [vmem:[%s210 + $0x108] sm:$0xff] %v277
                  %v279 = vld [vmem:[%s209 + $0x220] sm:$0xff]
                  %280 = vst [vmem:[%s210 + $0x110] sm:$0xff] %v279
                  %v281 = vld [vmem:[%s209 + $0x230] sm:$0xff]
                  %282 = vst [vmem:[%s210 + $0x118] sm:$0xff] %v281
                  %v283 = vld [vmem:[%s209 + $0x240] sm:$0xff]
                  %284 = vst [vmem:[%s210 + $0x120] sm:$0xff] %v283
                  %v285 = vld [vmem:[%s209 + $0x250] sm:$0xff]
                  %286 = vst [vmem:[%s210 + $0x128] sm:$0xff] %v285
                  %v287 = vld [vmem:[%s209 + $0x260] sm:$0xff]
                  %288 = vst [vmem:[%s210 + $0x130] sm:$0xff] %v287
                  %v289 = vld [vmem:[%s209 + $0x270] sm:$0xff]
                  %290 = vst [vmem:[%s210 + $0x138] sm:$0xff] %v289
                  %v291 = vld [vmem:[%s209 + $0x280] sm:$0xff]
                  %292 = vst [vmem:[%s210 + $0x140] sm:$0xff] %v291
                  %v293 = vld [vmem:[%s209 + $0x290] sm:$0xff]
                  %294 = vst [vmem:[%s210 + $0x148] sm:$0xff] %v293
                  %v295 = vld [vmem:[%s209 + $0x2a0] sm:$0xff]
                  %296 = vst [vmem:[%s210 + $0x150] sm:$0xff] %v295
                  %v297 = vld [vmem:[%s209 + $0x2b0] sm:$0xff]
                  %298 = vst [vmem:[%s210 + $0x158] sm:$0xff] %v297
                  %v299 = vld [vmem:[%s209 + $0x2c0] sm:$0xff]
                  %300 = vst [vmem:[%s210 + $0x160] sm:$0xff] %v299
                  %v301 = vld [vmem:[%s209 + $0x2d0] sm:$0xff]
                  %302 = vst [vmem:[%s210 + $0x168] sm:$0xff] %v301
                  %v303 = vld [vmem:[%s209 + $0x2e0] sm:$0xff]
                  %304 = vst [vmem:[%s210 + $0x170] sm:$0xff] %v303
                  %v305 = vld [vmem:[%s209 + $0x2f0] sm:$0xff]
                  %306 = vst [vmem:[%s210 + $0x178] sm:$0xff] %v305
                $region48: #{tpu_custom_call.1} parent=42 // loop_footer
                  %s208 = sadd.s32 1, %s204
                $region49: #{tpu_custom_call.1} parent=42 // loop_footer_branch
                  %203 = sbr.rel target = $region45
                $region50: #{tpu_custom_call.1} parent=42 // loop_exit
                  _
              $region43: #{tpu_custom_call.1} parent=27 // pred_fallthru
                _
              // Predicated region
              $region51: #{tpu_custom_call.1} parent=27 // pred_check
                _
              $region52: #{tpu_custom_call.1} parent=27 // pred_check_branch
                %308 = sbr.rel target = $region54
              $region53: #{tpu_custom_call.1} parent=27 // pred_region
                _
              $region54: #{tpu_custom_call.1} parent=27 // pred_fallthru
                _
            $region28: #{tpu_custom_call.1} parent=23 // pred_fallthru
              _
            // Predicated region
            $region29: #{tpu_custom_call.1} parent=23 // pred_check
              _
            $region30: #{tpu_custom_call.1} parent=23 // pred_check_branch
              %95 = sbr.rel target = $region32
            $region31: #{tpu_custom_call.1} parent=23 // pred_region
              loop: start=0, step=1, limit=1
              $region33: #{tpu_custom_call.1} parent=31 // loop_pre_header
                _
              $region34: #{tpu_custom_call.1} parent=31 // loop_header
                %s98 = sphi 0, %s102
                %p99 = scmp.ge.s32.totalorder %s98, 1
                %s103 = sphi %s89, %s89
                %s104 = sphi %s87, %s87
              $region35: #{tpu_custom_call.1} parent=31 // loop_header_branch
                %101 = sbr.rel (%p99) target = $region39
              $region36: #{tpu_custom_call.1} parent=31 // loop_body
                %v105 = vld [vmem:[%s103] sm:$0xff]
                %106 = vst [vmem:[%s104] sm:$0xff] %v105
                %v107 = vld [vmem:[%s103 + $0x10] sm:$0xff]
                %108 = vst [vmem:[%s104 + $0x8] sm:$0xff] %v107
                %v109 = vld [vmem:[%s103 + $0x20] sm:$0xff]
                %110 = vst [vmem:[%s104 + $0x10] sm:$0xff] %v109
                %v111 = vld [vmem:[%s103 + $0x30] sm:$0xff]
                %112 = vst [vmem:[%s104 + $0x18] sm:$0xff] %v111
                %v113 = vld [vmem:[%s103 + $0x40] sm:$0xff]
                %114 = vst [vmem:[%s104 + $0x20] sm:$0xff] %v113
                %v115 = vld [vmem:[%s103 + $0x50] sm:$0xff]
                %116 = vst [vmem:[%s104 + $0x28] sm:$0xff] %v115
                %v117 = vld [vmem:[%s103 + $0x60] sm:$0xff]
                %118 = vst [vmem:[%s104 + $0x30] sm:$0xff] %v117
                %v119 = vld [vmem:[%s103 + $0x70] sm:$0xff]
                %120 = vst [vmem:[%s104 + $0x38] sm:$0xff] %v119
                %v121 = vld [vmem:[%s103 + $0x80] sm:$0xff]
                %122 = vst [vmem:[%s104 + $0x40] sm:$0xff] %v121
                %v123 = vld [vmem:[%s103 + $0x90] sm:$0xff]
                %124 = vst [vmem:[%s104 + $0x48] sm:$0xff] %v123
                %v125 = vld [vmem:[%s103 + $0xa0] sm:$0xff]
                %126 = vst [vmem:[%s104 + $0x50] sm:$0xff] %v125
                %v127 = vld [vmem:[%s103 + $0xb0] sm:$0xff]
                %128 = vst [vmem:[%s104 + $0x58] sm:$0xff] %v127
                %v129 = vld [vmem:[%s103 + $0xc0] sm:$0xff]
                %130 = vst [vmem:[%s104 + $0x60] sm:$0xff] %v129
                %v131 = vld [vmem:[%s103 + $0xd0] sm:$0xff]
                %132 = vst [vmem:[%s104 + $0x68] sm:$0xff] %v131
                %v133 = vld [vmem:[%s103 + $0xe0] sm:$0xff]
                %134 = vst [vmem:[%s104 + $0x70] sm:$0xff] %v133
                %v135 = vld [vmem:[%s103 + $0xf0] sm:$0xff]
                %136 = vst [vmem:[%s104 + $0x78] sm:$0xff] %v135
                %v137 = vld [vmem:[%s103 + $0x100] sm:$0xff]
                %138 = vst [vmem:[%s104 + $0x80] sm:$0xff] %v137
                %v139 = vld [vmem:[%s103 + $0x110] sm:$0xff]
                %140 = vst [vmem:[%s104 + $0x88] sm:$0xff] %v139
                %v141 = vld [vmem:[%s103 + $0x120] sm:$0xff]
                %142 = vst [vmem:[%s104 + $0x90] sm:$0xff] %v141
                %v143 = vld [vmem:[%s103 + $0x130] sm:$0xff]
                %144 = vst [vmem:[%s104 + $0x98] sm:$0xff] %v143
                %v145 = vld [vmem:[%s103 + $0x140] sm:$0xff]
                %146 = vst [vmem:[%s104 + $0xa0] sm:$0xff] %v145
                %v147 = vld [vmem:[%s103 + $0x150] sm:$0xff]
                %148 = vst [vmem:[%s104 + $0xa8] sm:$0xff] %v147
                %v149 = vld [vmem:[%s103 + $0x160] sm:$0xff]
                %150 = vst [vmem:[%s104 + $0xb0] sm:$0xff] %v149
                %v151 = vld [vmem:[%s103 + $0x170] sm:$0xff]
                %152 = vst [vmem:[%s104 + $0xb8] sm:$0xff] %v151
                %v153 = vld [vmem:[%s103 + $0x180] sm:$0xff]
                %154 = vst [vmem:[%s104 + $0xc0] sm:$0xff] %v153
                %v155 = vld [vmem:[%s103 + $0x190] sm:$0xff]
                %156 = vst [vmem:[%s104 + $0xc8] sm:$0xff] %v155
                %v157 = vld [vmem:[%s103 + $0x1a0] sm:$0xff]
                %158 = vst [vmem:[%s104 + $0xd0] sm:$0xff] %v157
                %v159 = vld [vmem:[%s103 + $0x1b0] sm:$0xff]
                %160 = vst [vmem:[%s104 + $0xd8] sm:$0xff] %v159
                %v161 = vld [vmem:[%s103 + $0x1c0] sm:$0xff]
                %162 = vst [vmem:[%s104 + $0xe0] sm:$0xff] %v161
                %v163 = vld [vmem:[%s103 + $0x1d0] sm:$0xff]
                %164 = vst [vmem:[%s104 + $0xe8] sm:$0xff] %v163
                %v165 = vld [vmem:[%s103 + $0x1e0] sm:$0xff]
                %166 = vst [vmem:[%s104 + $0xf0] sm:$0xff] %v165
                %v167 = vld [vmem:[%s103 + $0x1f0] sm:$0xff]
                %168 = vst [vmem:[%s104 + $0xf8] sm:$0xff] %v167
                %v169 = vld [vmem:[%s103 + $0x200] sm:$0xff]
                %170 = vst [vmem:[%s104 + $0x100] sm:$0xff] %v169
                %v171 = vld [vmem:[%s103 + $0x210] sm:$0xff]
                %172 = vst [vmem:[%s104 + $0x108] sm:$0xff] %v171
                %v173 = vld [vmem:[%s103 + $0x220] sm:$0xff]
                %174 = vst [vmem:[%s104 + $0x110] sm:$0xff] %v173
                %v175 = vld [vmem:[%s103 + $0x230] sm:$0xff]
                %176 = vst [vmem:[%s104 + $0x118] sm:$0xff] %v175
                %v177 = vld [vmem:[%s103 + $0x240] sm:$0xff]
                %178 = vst [vmem:[%s104 + $0x120] sm:$0xff] %v177
                %v179 = vld [vmem:[%s103 + $0x250] sm:$0xff]
                %180 = vst [vmem:[%s104 + $0x128] sm:$0xff] %v179
                %v181 = vld [vmem:[%s103 + $0x260] sm:$0xff]
                %182 = vst [vmem:[%s104 + $0x130] sm:$0xff] %v181
                %v183 = vld [vmem:[%s103 + $0x270] sm:$0xff]
                %184 = vst [vmem:[%s104 + $0x138] sm:$0xff] %v183
                %v185 = vld [vmem:[%s103 + $0x280] sm:$0xff]
                %186 = vst [vmem:[%s104 + $0x140] sm:$0xff] %v185
                %v187 = vld [vmem:[%s103 + $0x290] sm:$0xff]
                %188 = vst [vmem:[%s104 + $0x148] sm:$0xff] %v187
                %v189 = vld [vmem:[%s103 + $0x2a0] sm:$0xff]
                %190 = vst [vmem:[%s104 + $0x150] sm:$0xff] %v189
                %v191 = vld [vmem:[%s103 + $0x2b0] sm:$0xff]
                %192 = vst [vmem:[%s104 + $0x158] sm:$0xff] %v191
                %v193 = vld [vmem:[%s103 + $0x2c0] sm:$0xff]
                %194 = vst [vmem:[%s104 + $0x160] sm:$0xff] %v193
                %v195 = vld [vmem:[%s103 + $0x2d0] sm:$0xff]
                %196 = vst [vmem:[%s104 + $0x168] sm:$0xff] %v195
                %v197 = vld [vmem:[%s103 + $0x2e0] sm:$0xff]
                %198 = vst [vmem:[%s104 + $0x170] sm:$0xff] %v197
                %v199 = vld [vmem:[%s103 + $0x2f0] sm:$0xff]
                %200 = vst [vmem:[%s104 + $0x178] sm:$0xff] %v199
              $region37: #{tpu_custom_call.1} parent=31 // loop_footer
                %s102 = sadd.s32 1, %s98
              $region38: #{tpu_custom_call.1} parent=31 // loop_footer_branch
                %97 = sbr.rel target = $region34
              $region39: #{tpu_custom_call.1} parent=31 // loop_exit
                _
            $region32: #{tpu_custom_call.1} parent=23 // pred_fallthru
              _
          $region24: #{tpu_custom_call.1} parent=19 // pred_fallthru
            _
          %309 = vnop
        $region20: #{tpu_custom_call.1} parent=15 // pred_fallthru
          _
      $region16: #{tpu_custom_call.1} parent=5 // pred_fallthru
        _
      %p310 = scmp.le.s32.totalorder 1, %s10
      %p311 = scmp.lt.s32.totalorder %s10, 3
      %p312 = pnand %p310, %p311
      %p313 = pneg %p312
      // Predicated region
      $region55: #{tpu_custom_call.1} parent=5 // pred_check
        _
      $region56: #{tpu_custom_call.1} parent=5 // pred_check_branch
        %315 = sbr.rel (%p312) target = $region58
      $region57: #{tpu_custom_call.1} parent=5 // pred_region
        %s316 = ssub.s32 %s10, 1
        %s317 = sand.u32 %s23, 1
        %s318 = sand.u32 %s23, 1
        %s319 = smul.addr %s318, 384
        %s320 = scalar_lea.vmem [#allocation2], %s319
        // Predicated region
        $region59: #{tpu_custom_call.1} parent=57 // pred_check
          %p321 = pneg %p36
        $region60: #{tpu_custom_call.1} parent=57 // pred_check_branch
          %323 = sbr.rel (%p321) target = $region62
        $region61: #{tpu_custom_call.1} parent=57 // pred_region
          _
        $region62: #{tpu_custom_call.1} parent=57 // pred_fallthru
          _
        %s324 = sand.u32 %s23, 1
        %s325 = sand.u32 %s23, 1
        %s326 = smul.addr %s325, 384
        %s327 = scalar_lea.vmem [#allocation2], %s326
        %p328 = pneg %p36
        %p329 = pneg %p33
        %p330 = pneg %p62
        %p331 = pneg %p59
        %s332 = sand.u32 %s49, 1
        %s333 = scalar_lea.sflag [#allocation4], %s332
        %s334 = sand.u32 %s49, 1
        %s335 = smul.addr %s334, 408
        %s336 = scalar_lea.vmem [#allocation3], %s335
        %v337 = vld [vmem:[%s320] sm:$0xff]
        %v338 = vld [vmem:[%s320 + $0x8] sm:$0xff]
        %v339 = vld [vmem:[%s320 + $0x10] sm:$0xf]
        %v340 = vld [vmem:[%s320 + $0x18] sm:$0xff]
        %v341 = vld [vmem:[%s320 + $0x20] sm:$0xff]
        %v342 = vld [vmem:[%s320 + $0x28] sm:$0xf]
        %v343 = vld [vmem:[%s320 + $0x30] sm:$0xff]
        %v344 = vld [vmem:[%s320 + $0x38] sm:$0xff]
        %v345 = vld [vmem:[%s320 + $0x40] sm:$0xf]
        %v346 = vld [vmem:[%s320 + $0x48] sm:$0xff]
        %v347 = vld [vmem:[%s320 + $0x50] sm:$0xff]
        %v348 = vld [vmem:[%s320 + $0x58] sm:$0xf]
        %v349 = vld [vmem:[%s320 + $0x60] sm:$0xff]
        %v350 = vld [vmem:[%s320 + $0x68] sm:$0xff]
        %v351 = vld [vmem:[%s320 + $0x70] sm:$0xf]
        %v352 = vld [vmem:[%s320 + $0x78] sm:$0xff]
        %v353 = vld [vmem:[%s320 + $0x80] sm:$0xff]
        %v354 = vld [vmem:[%s320 + $0x88] sm:$0xf]
        %v355 = vld [vmem:[%s320 + $0x90] sm:$0xff]
        %v356 = vld [vmem:[%s320 + $0x98] sm:$0xff]
        %v357 = vld [vmem:[%s320 + $0xa0] sm:$0xf]
        %v358 = vld [vmem:[%s320 + $0xa8] sm:$0xff]
        %v359 = vld [vmem:[%s320 + $0xb0] sm:$0xff]
        %v360 = vld [vmem:[%s320 + $0xb8] sm:$0xf]
        %v361 = vld [vmem:[%s320 + $0xc0] sm:$0xff]
        %v362 = vld [vmem:[%s320 + $0xc8] sm:$0xff]
        %v363 = vld [vmem:[%s320 + $0xd0] sm:$0xf]
        %v364 = vld [vmem:[%s320 + $0xd8] sm:$0xff]
        %v365 = vld [vmem:[%s320 + $0xe0] sm:$0xff]
        %v366 = vld [vmem:[%s320 + $0xe8] sm:$0xf]
        %v367 = vld [vmem:[%s320 + $0xf0] sm:$0xff]
        %v368 = vld [vmem:[%s320 + $0xf8] sm:$0xff]
        %v369 = vld [vmem:[%s320 + $0x100] sm:$0xf]
        %v370 = vld [vmem:[%s320 + $0x108] sm:$0xff]
        %v371 = vld [vmem:[%s320 + $0x110] sm:$0xff]
        %v372 = vld [vmem:[%s320 + $0x118] sm:$0xf]
        %v373 = vld [vmem:[%s320 + $0x120] sm:$0xff]
        %v374 = vld [vmem:[%s320 + $0x128] sm:$0xff]
        %v375 = vld [vmem:[%s320 + $0x130] sm:$0xf]
        %v376 = vld [vmem:[%s320 + $0x138] sm:$0xff]
        %v377 = vld [vmem:[%s320 + $0x140] sm:$0xff]
        %v378 = vld [vmem:[%s320 + $0x148] sm:$0xf]
        %v379 = vld [vmem:[%s320 + $0x150] sm:$0xff]
        %v380 = vld [vmem:[%s320 + $0x158] sm:$0xff]
        %v381 = vld [vmem:[%s320 + $0x160] sm:$0xf]
        %v382 = vld [vmem:[%s320 + $0x168] sm:$0xff]
        %v383 = vld [vmem:[%s320 + $0x170] sm:$0xff]
        %v384 = vld [vmem:[%s320 + $0x178] sm:$0xf]
        %v385 = vmax.f32 %v337, %v340
        %v386 = vmax.f32 %v338, %v341
        %vm387 = vcmask 1043456
        %v388 = vsel %vm387, %v339, -inf
        %v389 = vsel %vm387, %v342, -inf
        %v390 = vmax.f32 %v388, %v389
        %v391 = vmax.f32 %v340, %v343
        %v392 = vmax.f32 %v341, %v344
        %v393 = vsel %vm387, %v345, -inf
        %v394 = vmax.f32 %v389, %v393
        %v395 = vmax.f32 %v343, %v346
        %v396 = vmax.f32 %v344, %v347
        %v397 = vsel %vm387, %v348, -inf
        %v398 = vmax.f32 %v393, %v397
        %v399 = vmax.f32 %v346, %v349
        %v400 = vmax.f32 %v347, %v350
        %v401 = vsel %vm387, %v351, -inf
        %v402 = vmax.f32 %v397, %v401
        %v403 = vmax.f32 %v349, %v352
        %v404 = vmax.f32 %v350, %v353
        %v405 = vsel %vm387, %v354, -inf
        %v406 = vmax.f32 %v401, %v405
        %v407 = vmax.f32 %v352, %v355
        %v408 = vmax.f32 %v353, %v356
        %v409 = vsel %vm387, %v357, -inf
        %v410 = vmax.f32 %v405, %v409
        %v411 = vmax.f32 %v355, %v358
        %v412 = vmax.f32 %v356, %v359
        %v413 = vsel %vm387, %v360, -inf
        %v414 = vmax.f32 %v409, %v413
        %v415 = vmax.f32 %v358, %v361
        %v416 = vmax.f32 %v359, %v362
        %v417 = vsel %vm387, %v363, -inf
        %v418 = vmax.f32 %v413, %v417
        %v419 = vmax.f32 %v361, %v364
        %v420 = vmax.f32 %v362, %v365
        %v421 = vsel %vm387, %v366, -inf
        %v422 = vmax.f32 %v417, %v421
        %v423 = vmax.f32 %v364, %v367
        %v424 = vmax.f32 %v365, %v368
        %v425 = vsel %vm387, %v369, -inf
        %v426 = vmax.f32 %v421, %v425
        %v427 = vmax.f32 %v367, %v370
        %v428 = vmax.f32 %v368, %v371
        %v429 = vsel %vm387, %v372, -inf
        %v430 = vmax.f32 %v425, %v429
        %v431 = vmax.f32 %v370, %v373
        %v432 = vmax.f32 %v371, %v374
        %v433 = vsel %vm387, %v375, -inf
        %v434 = vmax.f32 %v429, %v433
        %v435 = vmax.f32 %v373, %v376
        %v436 = vmax.f32 %v374, %v377
        %v437 = vsel %vm387, %v378, -inf
        %v438 = vmax.f32 %v433, %v437
        %v439 = vmax.f32 %v376, %v379
        %v440 = vmax.f32 %v377, %v380
        %v441 = vsel %vm387, %v381, -inf
        %v442 = vmax.f32 %v437, %v441
        %v443 = vmax.f32 %v379, %v382
        %v444 = vmax.f32 %v380, %v383
        %v445 = vsel %vm387, %v384, -inf
        %v446 = vmax.f32 %v441, %v445
        %vm447 = vcmask 1041408
        %v448 = vsel %vm447, %v385, -inf
        %v449 = vrot.slane %v448, 4
        %v450 = vmax.f32 %v448, %v449
        %v451 = vrot.slane %v450, 2
        %v452 = vmax.f32 %v450, %v451
        %v453 = vrot.slane %v452, 1
        %v454 = vmax.f32 %v452, %v453
        %v455 = vsel %vm447, %v395, -inf
        %v456 = vrot.slane %v455, 4
        %v457 = vmax.f32 %v455, %v456
        %v458 = vrot.slane %v457, 2
        %v459 = vmax.f32 %v457, %v458
        %v460 = vrot.slane %v459, 1
        %v461 = vmax.f32 %v459, %v460
        %v462 = vsel %vm447, %v403, -inf
        %v463 = vrot.slane %v462, 4
        %v464 = vmax.f32 %v462, %v463
        %v465 = vrot.slane %v464, 2
        %v466 = vmax.f32 %v464, %v465
        %v467 = vrot.slane %v466, 1
        %v468 = vmax.f32 %v466, %v467
        %v469 = vsel %vm447, %v411, -inf
        %v470 = vrot.slane %v469, 4
        %v471 = vmax.f32 %v469, %v470
        %v472 = vrot.slane %v471, 2
        %v473 = vmax.f32 %v471, %v472
        %v474 = vrot.slane %v473, 1
        %v475 = vmax.f32 %v473, %v474
        %v476 = vsel %vm447, %v419, -inf
        %v477 = vrot.slane %v476, 4
        %v478 = vmax.f32 %v476, %v477
        %v479 = vrot.slane %v478, 2
        %v480 = vmax.f32 %v478, %v479
        %v481 = vrot.slane %v480, 1
        %v482 = vmax.f32 %v480, %v481
        %v483 = vsel %vm447, %v427, -inf
        %v484 = vrot.slane %v483, 4
        %v485 = vmax.f32 %v483, %v484
        %v486 = vrot.slane %v485, 2
        %v487 = vmax.f32 %v485, %v486
        %v488 = vrot.slane %v487, 1
        %v489 = vmax.f32 %v487, %v488
        %v490 = vsel %vm447, %v435, -inf
        %v491 = vrot.slane %v490, 4
        %v492 = vmax.f32 %v490, %v491
        %v493 = vrot.slane %v492, 2
        %v494 = vmax.f32 %v492, %v493
        %v495 = vrot.slane %v494, 1
        %v496 = vmax.f32 %v494, %v495
        %v497 = vsel %vm447, %v443, -inf
        %v498 = vrot.slane %v497, 4
        %v499 = vmax.f32 %v497, %v498
        %v500 = vrot.slane %v499, 2
        %v501 = vmax.f32 %v499, %v500
        %v502 = vrot.slane %v501, 1
        %v503 = vmax.f32 %v501, %v502
        %vm504 = vcmask 1043458
        %v505 = vsel %vm504, %v385, -inf
        %v506 = vrot.slane %v505, 4
        %v507 = vmax.f32 %v505, %v506
        %v508 = vrot.slane %v507, 2
        %v509 = vmax.f32 %v507, %v508
        %v510 = vrot.slane %v509, 1
        %v511 = vmax.f32 %v509, %v510
        %v512 = vsel %vm504, %v395, -inf
        %v513 = vrot.slane %v512, 4
        %v514 = vmax.f32 %v512, %v513
        %v515 = vrot.slane %v514, 2
        %v516 = vmax.f32 %v514, %v515
        %v517 = vrot.slane %v516, 1
        %v518 = vmax.f32 %v516, %v517
        %v519 = vsel %vm504, %v403, -inf
        %v520 = vrot.slane %v519, 4
        %v521 = vmax.f32 %v519, %v520
        %v522 = vrot.slane %v521, 2
        %v523 = vmax.f32 %v521, %v522
        %v524 = vrot.slane %v523, 1
        %v525 = vmax.f32 %v523, %v524
        %v526 = vsel %vm504, %v411, -inf
        %v527 = vrot.slane %v526, 4
        %v528 = vmax.f32 %v526, %v527
        %v529 = vrot.slane %v528, 2
        %v530 = vmax.f32 %v528, %v529
        %v531 = vrot.slane %v530, 1
        %v532 = vmax.f32 %v530, %v531
        %v533 = vsel %vm504, %v419, -inf
        %v534 = vrot.slane %v533, 4
        %v535 = vmax.f32 %v533, %v534
        %v536 = vrot.slane %v535, 2
        %v537 = vmax.f32 %v535, %v536
        %v538 = vrot.slane %v537, 1
        %v539 = vmax.f32 %v537, %v538
        %v540 = vsel %vm504, %v427, -inf
        %v541 = vrot.slane %v540, 4
        %v542 = vmax.f32 %v540, %v541
        %v543 = vrot.slane %v542, 2
        %v544 = vmax.f32 %v542, %v543
        %v545 = vrot.slane %v544, 1
        %v546 = vmax.f32 %v544, %v545
        %v547 = vsel %vm504, %v435, -inf
        %v548 = vrot.slane %v547, 4
        %v549 = vmax.f32 %v547, %v548
        %v550 = vrot.slane %v549, 2
        %v551 = vmax.f32 %v549, %v550
        %v552 = vrot.slane %v551, 1
        %v553 = vmax.f32 %v551, %v552
        %v554 = vsel %vm504, %v443, -inf
        %v555 = vrot.slane %v554, 4
        %v556 = vmax.f32 %v554, %v555
        %v557 = vrot.slane %v556, 2
        %v558 = vmax.f32 %v556, %v557
        %v559 = vrot.slane %v558, 1
        %v560 = vmax.f32 %v558, %v559
        %vm561 = vcmask 1045508
        %v562 = vsel %vm561, %v385, -inf
        %v563 = vrot.slane %v562, 4
        %v564 = vmax.f32 %v562, %v563
        %v565 = vrot.slane %v564, 2
        %v566 = vmax.f32 %v564, %v565
        %v567 = vrot.slane %v566, 1
        %v568 = vmax.f32 %v566, %v567
        %v569 = vsel %vm561, %v395, -inf
        %v570 = vrot.slane %v569, 4
        %v571 = vmax.f32 %v569, %v570
        %v572 = vrot.slane %v571, 2
        %v573 = vmax.f32 %v571, %v572
        %v574 = vrot.slane %v573, 1
        %v575 = vmax.f32 %v573, %v574
        %v576 = vsel %vm561, %v403, -inf
        %v577 = vrot.slane %v576, 4
        %v578 = vmax.f32 %v576, %v577
        %v579 = vrot.slane %v578, 2
        %v580 = vmax.f32 %v578, %v579
        %v581 = vrot.slane %v580, 1
        %v582 = vmax.f32 %v580, %v581
        %v583 = vsel %vm561, %v411, -inf
        %v584 = vrot.slane %v583, 4
        %v585 = vmax.f32 %v583, %v584
        %v586 = vrot.slane %v585, 2
        %v587 = vmax.f32 %v585, %v586
        %v588 = vrot.slane %v587, 1
        %v589 = vmax.f32 %v587, %v588
        %v590 = vsel %vm561, %v419, -inf
        %v591 = vrot.slane %v590, 4
        %v592 = vmax.f32 %v590, %v591
        %v593 = vrot.slane %v592, 2
        %v594 = vmax.f32 %v592, %v593
        %v595 = vrot.slane %v594, 1
        %v596 = vmax.f32 %v594, %v595
        %v597 = vsel %vm561, %v427, -inf
        %v598 = vrot.slane %v597, 4
        %v599 = vmax.f32 %v597, %v598
        %v600 = vrot.slane %v599, 2
        %v601 = vmax.f32 %v599, %v600
        %v602 = vrot.slane %v601, 1
        %v603 = vmax.f32 %v601, %v602
        %v604 = vsel %vm561, %v435, -inf
        %v605 = vrot.slane %v604, 4
        %v606 = vmax.f32 %v604, %v605
        %v607 = vrot.slane %v606, 2
        %v608 = vmax.f32 %v606, %v607
        %v609 = vrot.slane %v608, 1
        %v610 = vmax.f32 %v608, %v609
        %v611 = vsel %vm561, %v443, -inf
        %v612 = vrot.slane %v611, 4
        %v613 = vmax.f32 %v611, %v612
        %v614 = vrot.slane %v613, 2
        %v615 = vmax.f32 %v613, %v614
        %v616 = vrot.slane %v615, 1
        %v617 = vmax.f32 %v615, %v616
        %vm618 = vcmask 1047558
        %v619 = vsel %vm618, %v385, -inf
        %v620 = vrot.slane %v619, 4
        %v621 = vmax.f32 %v619, %v620
        %v622 = vrot.slane %v621, 2
        %v623 = vmax.f32 %v621, %v622
        %v624 = vrot.slane %v623, 1
        %v625 = vmax.f32 %v623, %v624
        %v626 = vsel %vm618, %v395, -inf
        %v627 = vrot.slane %v626, 4
        %v628 = vmax.f32 %v626, %v627
        %v629 = vrot.slane %v628, 2
        %v630 = vmax.f32 %v628, %v629
        %v631 = vrot.slane %v630, 1
        %v632 = vmax.f32 %v630, %v631
        %v633 = vsel %vm618, %v403, -inf
        %v634 = vrot.slane %v633, 4
        %v635 = vmax.f32 %v633, %v634
        %v636 = vrot.slane %v635, 2
        %v637 = vmax.f32 %v635, %v636
        %v638 = vrot.slane %v637, 1
        %v639 = vmax.f32 %v637, %v638
        %v640 = vsel %vm618, %v411, -inf
        %v641 = vrot.slane %v640, 4
        %v642 = vmax.f32 %v640, %v641
        %v643 = vrot.slane %v642, 2
        %v644 = vmax.f32 %v642, %v643
        %v645 = vrot.slane %v644, 1
        %v646 = vmax.f32 %v644, %v645
        %v647 = vsel %vm618, %v419, -inf
        %v648 = vrot.slane %v647, 4
        %v649 = vmax.f32 %v647, %v648
        %v650 = vrot.slane %v649, 2
        %v651 = vmax.f32 %v649, %v650
        %v652 = vrot.slane %v651, 1
        %v653 = vmax.f32 %v651, %v652
        %v654 = vsel %vm618, %v427, -inf
        %v655 = vrot.slane %v654, 4
        %v656 = vmax.f32 %v654, %v655
        %v657 = vrot.slane %v656, 2
        %v658 = vmax.f32 %v656, %v657
        %v659 = vrot.slane %v658, 1
        %v660 = vmax.f32 %v658, %v659
        %v661 = vsel %vm618, %v435, -inf
        %v662 = vrot.slane %v661, 4
        %v663 = vmax.f32 %v661, %v662
        %v664 = vrot.slane %v663, 2
        %v665 = vmax.f32 %v663, %v664
        %v666 = vrot.slane %v665, 1
        %v667 = vmax.f32 %v665, %v666
        %v668 = vsel %vm618, %v443, -inf
        %v669 = vrot.slane %v668, 4
        %v670 = vmax.f32 %v668, %v669
        %v671 = vrot.slane %v670, 2
        %v672 = vmax.f32 %v670, %v671
        %v673 = vrot.slane %v672, 1
        %v674 = vmax.f32 %v672, %v673
        %v675 = vsel %vm447, %v386, -inf
        %v676 = vrot.slane %v675, 4
        %v677 = vmax.f32 %v675, %v676
        %v678 = vrot.slane %v677, 2
        %v679 = vmax.f32 %v677, %v678
        %v680 = vrot.slane %v679, 1
        %v681 = vmax.f32 %v679, %v680
        %v682 = vsel %vm447, %v396, -inf
        %v683 = vrot.slane %v682, 4
        %v684 = vmax.f32 %v682, %v683
        %v685 = vrot.slane %v684, 2
        %v686 = vmax.f32 %v684, %v685
        %v687 = vrot.slane %v686, 1
        %v688 = vmax.f32 %v686, %v687
        %v689 = vsel %vm447, %v404, -inf
        %v690 = vrot.slane %v689, 4
        %v691 = vmax.f32 %v689, %v690
        %v692 = vrot.slane %v691, 2
        %v693 = vmax.f32 %v691, %v692
        %v694 = vrot.slane %v693, 1
        %v695 = vmax.f32 %v693, %v694
        %v696 = vsel %vm447, %v412, -inf
        %v697 = vrot.slane %v696, 4
        %v698 = vmax.f32 %v696, %v697
        %v699 = vrot.slane %v698, 2
        %v700 = vmax.f32 %v698, %v699
        %v701 = vrot.slane %v700, 1
        %v702 = vmax.f32 %v700, %v701
        %v703 = vsel %vm447, %v420, -inf
        %v704 = vrot.slane %v703, 4
        %v705 = vmax.f32 %v703, %v704
        %v706 = vrot.slane %v705, 2
        %v707 = vmax.f32 %v705, %v706
        %v708 = vrot.slane %v707, 1
        %v709 = vmax.f32 %v707, %v708
        %v710 = vsel %vm447, %v428, -inf
        %v711 = vrot.slane %v710, 4
        %v712 = vmax.f32 %v710, %v711
        %v713 = vrot.slane %v712, 2
        %v714 = vmax.f32 %v712, %v713
        %v715 = vrot.slane %v714, 1
        %v716 = vmax.f32 %v714, %v715
        %v717 = vsel %vm447, %v436, -inf
        %v718 = vrot.slane %v717, 4
        %v719 = vmax.f32 %v717, %v718
        %v720 = vrot.slane %v719, 2
        %v721 = vmax.f32 %v719, %v720
        %v722 = vrot.slane %v721, 1
        %v723 = vmax.f32 %v721, %v722
        %v724 = vsel %vm447, %v444, -inf
        %v725 = vrot.slane %v724, 4
        %v726 = vmax.f32 %v724, %v725
        %v727 = vrot.slane %v726, 2
        %v728 = vmax.f32 %v726, %v727
        %v729 = vrot.slane %v728, 1
        %v730 = vmax.f32 %v728, %v729
        %v731 = vsel %vm504, %v386, -inf
        %v732 = vrot.slane %v731, 4
        %v733 = vmax.f32 %v731, %v732
        %v734 = vrot.slane %v733, 2
        %v735 = vmax.f32 %v733, %v734
        %v736 = vrot.slane %v735, 1
        %v737 = vmax.f32 %v735, %v736
        %v738 = vsel %vm504, %v396, -inf
        %v739 = vrot.slane %v738, 4
        %v740 = vmax.f32 %v738, %v739
        %v741 = vrot.slane %v740, 2
        %v742 = vmax.f32 %v740, %v741
        %v743 = vrot.slane %v742, 1
        %v744 = vmax.f32 %v742, %v743
        %v745 = vsel %vm504, %v404, -inf
        %v746 = vrot.slane %v745, 4
        %v747 = vmax.f32 %v745, %v746
        %v748 = vrot.slane %v747, 2
        %v749 = vmax.f32 %v747, %v748
        %v750 = vrot.slane %v749, 1
        %v751 = vmax.f32 %v749, %v750
        %v752 = vsel %vm504, %v412, -inf
        %v753 = vrot.slane %v752, 4
        %v754 = vmax.f32 %v752, %v753
        %v755 = vrot.slane %v754, 2
        %v756 = vmax.f32 %v754, %v755
        %v757 = vrot.slane %v756, 1
        %v758 = vmax.f32 %v756, %v757
        %v759 = vsel %vm504, %v420, -inf
        %v760 = vrot.slane %v759, 4
        %v761 = vmax.f32 %v759, %v760
        %v762 = vrot.slane %v761, 2
        %v763 = vmax.f32 %v761, %v762
        %v764 = vrot.slane %v763, 1
        %v765 = vmax.f32 %v763, %v764
        %v766 = vsel %vm504, %v428, -inf
        %v767 = vrot.slane %v766, 4
        %v768 = vmax.f32 %v766, %v767
        %v769 = vrot.slane %v768, 2
        %v770 = vmax.f32 %v768, %v769
        %v771 = vrot.slane %v770, 1
        %v772 = vmax.f32 %v770, %v771
        %v773 = vsel %vm504, %v436, -inf
        %v774 = vrot.slane %v773, 4
        %v775 = vmax.f32 %v773, %v774
        %v776 = vrot.slane %v775, 2
        %v777 = vmax.f32 %v775, %v776
        %v778 = vrot.slane %v777, 1
        %v779 = vmax.f32 %v777, %v778
        %v780 = vsel %vm504, %v444, -inf
        %v781 = vrot.slane %v780, 4
        %v782 = vmax.f32 %v780, %v781
        %v783 = vrot.slane %v782, 2
        %v784 = vmax.f32 %v782, %v783
        %v785 = vrot.slane %v784, 1
        %v786 = vmax.f32 %v784, %v785
        %v787 = vsel %vm561, %v386, -inf
        %v788 = vrot.slane %v787, 4
        %v789 = vmax.f32 %v787, %v788
        %v790 = vrot.slane %v789, 2
        %v791 = vmax.f32 %v789, %v790
        %v792 = vrot.slane %v791, 1
        %v793 = vmax.f32 %v791, %v792
        %v794 = vsel %vm561, %v396, -inf
        %v795 = vrot.slane %v794, 4
        %v796 = vmax.f32 %v794, %v795
        %v797 = vrot.slane %v796, 2
        %v798 = vmax.f32 %v796, %v797
        %v799 = vrot.slane %v798, 1
        %v800 = vmax.f32 %v798, %v799
        %v801 = vsel %vm561, %v404, -inf
        %v802 = vrot.slane %v801, 4
        %v803 = vmax.f32 %v801, %v802
        %v804 = vrot.slane %v803, 2
        %v805 = vmax.f32 %v803, %v804
        %v806 = vrot.slane %v805, 1
        %v807 = vmax.f32 %v805, %v806
        %v808 = vsel %vm561, %v412, -inf
        %v809 = vrot.slane %v808, 4
        %v810 = vmax.f32 %v808, %v809
        %v811 = vrot.slane %v810, 2
        %v812 = vmax.f32 %v810, %v811
        %v813 = vrot.slane %v812, 1
        %v814 = vmax.f32 %v812, %v813
        %v815 = vsel %vm561, %v420, -inf
        %v816 = vrot.slane %v815, 4
        %v817 = vmax.f32 %v815, %v816
        %v818 = vrot.slane %v817, 2
        %v819 = vmax.f32 %v817, %v818
        %v820 = vrot.slane %v819, 1
        %v821 = vmax.f32 %v819, %v820
        %v822 = vsel %vm561, %v428, -inf
        %v823 = vrot.slane %v822, 4
        %v824 = vmax.f32 %v822, %v823
        %v825 = vrot.slane %v824, 2
        %v826 = vmax.f32 %v824, %v825
        %v827 = vrot.slane %v826, 1
        %v828 = vmax.f32 %v826, %v827
        %v829 = vsel %vm561, %v436, -inf
        %v830 = vrot.slane %v829, 4
        %v831 = vmax.f32 %v829, %v830
        %v832 = vrot.slane %v831, 2
        %v833 = vmax.f32 %v831, %v832
        %v834 = vrot.slane %v833, 1
        %v835 = vmax.f32 %v833, %v834
        %v836 = vsel %vm561, %v444, -inf
        %v837 = vrot.slane %v836, 4
        %v838 = vmax.f32 %v836, %v837
        %v839 = vrot.slane %v838, 2
        %v840 = vmax.f32 %v838, %v839
        %v841 = vrot.slane %v840, 1
        %v842 = vmax.f32 %v840, %v841
        %v843 = vsel %vm618, %v386, -inf
        %v844 = vrot.slane %v843, 4
        %v845 = vmax.f32 %v843, %v844
        %v846 = vrot.slane %v845, 2
        %v847 = vmax.f32 %v845, %v846
        %v848 = vrot.slane %v847, 1
        %v849 = vmax.f32 %v847, %v848
        %v850 = vsel %vm618, %v396, -inf
        %v851 = vrot.slane %v850, 4
        %v852 = vmax.f32 %v850, %v851
        %v853 = vrot.slane %v852, 2
        %v854 = vmax.f32 %v852, %v853
        %v855 = vrot.slane %v854, 1
        %v856 = vmax.f32 %v854, %v855
        %v857 = vsel %vm618, %v404, -inf
        %v858 = vrot.slane %v857, 4
        %v859 = vmax.f32 %v857, %v858
        %v860 = vrot.slane %v859, 2
        %v861 = vmax.f32 %v859, %v860
        %v862 = vrot.slane %v861, 1
        %v863 = vmax.f32 %v861, %v862
        %v864 = vsel %vm618, %v412, -inf
        %v865 = vrot.slane %v864, 4
        %v866 = vmax.f32 %v864, %v865
        %v867 = vrot.slane %v866, 2
        %v868 = vmax.f32 %v866, %v867
        %v869 = vrot.slane %v868, 1
        %v870 = vmax.f32 %v868, %v869
        %v871 = vsel %vm618, %v420, -inf
        %v872 = vrot.slane %v871, 4
        %v873 = vmax.f32 %v871, %v872
        %v874 = vrot.slane %v873, 2
        %v875 = vmax.f32 %v873, %v874
        %v876 = vrot.slane %v875, 1
        %v877 = vmax.f32 %v875, %v876
        %v878 = vsel %vm618, %v428, -inf
        %v879 = vrot.slane %v878, 4
        %v880 = vmax.f32 %v878, %v879
        %v881 = vrot.slane %v880, 2
        %v882 = vmax.f32 %v880, %v881
        %v883 = vrot.slane %v882, 1
        %v884 = vmax.f32 %v882, %v883
        %v885 = vsel %vm618, %v436, -inf
        %v886 = vrot.slane %v885, 4
        %v887 = vmax.f32 %v885, %v886
        %v888 = vrot.slane %v887, 2
        %v889 = vmax.f32 %v887, %v888
        %v890 = vrot.slane %v889, 1
        %v891 = vmax.f32 %v889, %v890
        %v892 = vsel %vm618, %v444, -inf
        %v893 = vrot.slane %v892, 4
        %v894 = vmax.f32 %v892, %v893
        %v895 = vrot.slane %v894, 2
        %v896 = vmax.f32 %v894, %v895
        %v897 = vrot.slane %v896, 1
        %v898 = vmax.f32 %v896, %v897
        %v899 = vsel %vm447, %v390, -inf
        %v900 = vrot.slane %v899, 4
        %v901 = vmax.f32 %v899, %v900
        %v902 = vrot.slane %v901, 2
        %v903 = vmax.f32 %v901, %v902
        %v904 = vrot.slane %v903, 1
        %v905 = vmax.f32 %v903, %v904
        %v906 = vsel %vm447, %v398, -inf
        %v907 = vrot.slane %v906, 4
        %v908 = vmax.f32 %v906, %v907
        %v909 = vrot.slane %v908, 2
        %v910 = vmax.f32 %v908, %v909
        %v911 = vrot.slane %v910, 1
        %v912 = vmax.f32 %v910, %v911
        %v913 = vsel %vm447, %v406, -inf
        %v914 = vrot.slane %v913, 4
        %v915 = vmax.f32 %v913, %v914
        %v916 = vrot.slane %v915, 2
        %v917 = vmax.f32 %v915, %v916
        %v918 = vrot.slane %v917, 1
        %v919 = vmax.f32 %v917, %v918
        %v920 = vsel %vm447, %v414, -inf
        %v921 = vrot.slane %v920, 4
        %v922 = vmax.f32 %v920, %v921
        %v923 = vrot.slane %v922, 2
        %v924 = vmax.f32 %v922, %v923
        %v925 = vrot.slane %v924, 1
        %v926 = vmax.f32 %v924, %v925
        %v927 = vsel %vm447, %v422, -inf
        %v928 = vrot.slane %v927, 4
        %v929 = vmax.f32 %v927, %v928
        %v930 = vrot.slane %v929, 2
        %v931 = vmax.f32 %v929, %v930
        %v932 = vrot.slane %v931, 1
        %v933 = vmax.f32 %v931, %v932
        %v934 = vsel %vm447, %v430, -inf
        %v935 = vrot.slane %v934, 4
        %v936 = vmax.f32 %v934, %v935
        %v937 = vrot.slane %v936, 2
        %v938 = vmax.f32 %v936, %v937
        %v939 = vrot.slane %v938, 1
        %v940 = vmax.f32 %v938, %v939
        %v941 = vsel %vm447, %v438, -inf
        %v942 = vrot.slane %v941, 4
        %v943 = vmax.f32 %v941, %v942
        %v944 = vrot.slane %v943, 2
        %v945 = vmax.f32 %v943, %v944
        %v946 = vrot.slane %v945, 1
        %v947 = vmax.f32 %v945, %v946
        %v948 = vsel %vm447, %v446, -inf
        %v949 = vrot.slane %v948, 4
        %v950 = vmax.f32 %v948, %v949
        %v951 = vrot.slane %v950, 2
        %v952 = vmax.f32 %v950, %v951
        %v953 = vrot.slane %v952, 1
        %v954 = vmax.f32 %v952, %v953
        %v955 = vsel %vm504, %v390, -inf
        %v956 = vrot.slane %v955, 4
        %v957 = vmax.f32 %v955, %v956
        %v958 = vrot.slane %v957, 2
        %v959 = vmax.f32 %v957, %v958
        %v960 = vrot.slane %v959, 1
        %v961 = vmax.f32 %v959, %v960
        %v962 = vsel %vm504, %v398, -inf
        %v963 = vrot.slane %v962, 4
        %v964 = vmax.f32 %v962, %v963
        %v965 = vrot.slane %v964, 2
        %v966 = vmax.f32 %v964, %v965
        %v967 = vrot.slane %v966, 1
        %v968 = vmax.f32 %v966, %v967
        %v969 = vsel %vm504, %v406, -inf
        %v970 = vrot.slane %v969, 4
        %v971 = vmax.f32 %v969, %v970
        %v972 = vrot.slane %v971, 2
        %v973 = vmax.f32 %v971, %v972
        %v974 = vrot.slane %v973, 1
        %v975 = vmax.f32 %v973, %v974
        %v976 = vsel %vm504, %v414, -inf
        %v977 = vrot.slane %v976, 4
        %v978 = vmax.f32 %v976, %v977
        %v979 = vrot.slane %v978, 2
        %v980 = vmax.f32 %v978, %v979
        %v981 = vrot.slane %v980, 1
        %v982 = vmax.f32 %v980, %v981
        %v983 = vsel %vm504, %v422, -inf
        %v984 = vrot.slane %v983, 4
        %v985 = vmax.f32 %v983, %v984
        %v986 = vrot.slane %v985, 2
        %v987 = vmax.f32 %v985, %v986
        %v988 = vrot.slane %v987, 1
        %v989 = vmax.f32 %v987, %v988
        %v990 = vsel %vm504, %v430, -inf
        %v991 = vrot.slane %v990, 4
        %v992 = vmax.f32 %v990, %v991
        %v993 = vrot.slane %v992, 2
        %v994 = vmax.f32 %v992, %v993
        %v995 = vrot.slane %v994, 1
        %v996 = vmax.f32 %v994, %v995
        %v997 = vsel %vm504, %v438, -inf
        %v998 = vrot.slane %v997, 4
        %v999 = vmax.f32 %v997, %v998
        %v1000 = vrot.slane %v999, 2
        %v1001 = vmax.f32 %v999, %v1000
        %v1002 = vrot.slane %v1001, 1
        %v1003 = vmax.f32 %v1001, %v1002
        %v1004 = vsel %vm504, %v446, -inf
        %v1005 = vrot.slane %v1004, 4
        %v1006 = vmax.f32 %v1004, %v1005
        %v1007 = vrot.slane %v1006, 2
        %v1008 = vmax.f32 %v1006, %v1007
        %v1009 = vrot.slane %v1008, 1
        %v1010 = vmax.f32 %v1008, %v1009
        %vm1011 = vcmask 1040384
        %v1012 = vsel %vm1011, %v454, %v511
        %v1013 = vsel %vm1011, %v461, %v518
        %v1014 = vsel %vm1011, %v468, %v525
        %v1015 = vsel %vm1011, %v475, %v532
        %v1016 = vsel %vm1011, %v482, %v539
        %v1017 = vsel %vm1011, %v489, %v546
        %v1018 = vsel %vm1011, %v496, %v553
        %v1019 = vsel %vm1011, %v503, %v560
        %v1020 = vsel %vm447, %v1012, %v568
        %v1021 = vsel %vm447, %v1013, %v575
        %v1022 = vsel %vm447, %v1014, %v582
        %v1023 = vsel %vm447, %v1015, %v589
        %v1024 = vsel %vm447, %v1016, %v596
        %v1025 = vsel %vm447, %v1017, %v603
        %v1026 = vsel %vm447, %v1018, %v610
        %v1027 = vsel %vm447, %v1019, %v617
        %vm1028 = vcmask 1042432
        %v1029 = vsel %vm1028, %v1020, %v625
        %v1030 = vsel %vm1028, %v1021, %v632
        %v1031 = vsel %vm1028, %v1022, %v639
        %v1032 = vsel %vm1028, %v1023, %v646
        %v1033 = vsel %vm1028, %v1024, %v653
        %v1034 = vsel %vm1028, %v1025, %v660
        %v1035 = vsel %vm1028, %v1026, %v667
        %v1036 = vsel %vm1028, %v1027, %v674
        %v1037 = vsel %vm387, %v1029, %v681
        %v1038 = vsel %vm387, %v1030, %v688
        %v1039 = vsel %vm387, %v1031, %v695
        %v1040 = vsel %vm387, %v1032, %v702
        %v1041 = vsel %vm387, %v1033, %v709
        %v1042 = vsel %vm387, %v1034, %v716
        %v1043 = vsel %vm387, %v1035, %v723
        %v1044 = vsel %vm387, %v1036, %v730
        %vm1045 = vcmask 1044480
        %v1046 = vsel %vm1045, %v1037, %v737
        %v1047 = vsel %vm1045, %v1038, %v744
        %v1048 = vsel %vm1045, %v1039, %v751
        %v1049 = vsel %vm1045, %v1040, %v758
        %v1050 = vsel %vm1045, %v1041, %v765
        %v1051 = vsel %vm1045, %v1042, %v772
        %v1052 = vsel %vm1045, %v1043, %v779
        %v1053 = vsel %vm1045, %v1044, %v786
        %vm1054 = vcmask 1045504
        %v1055 = vsel %vm1054, %v1046, %v793
        %v1056 = vsel %vm1054, %v1047, %v800
        %v1057 = vsel %vm1054, %v1048, %v807
        %v1058 = vsel %vm1054, %v1049, %v814
        %v1059 = vsel %vm1054, %v1050, %v821
        %v1060 = vsel %vm1054, %v1051, %v828
        %v1061 = vsel %vm1054, %v1052, %v835
        %v1062 = vsel %vm1054, %v1053, %v842
        %vm1063 = vcmask 1046528
        %v1064 = vsel %vm1063, %v1055, %v849
        %v1065 = vsel %vm1063, %v1056, %v856
        %v1066 = vsel %vm1063, %v1057, %v863
        %v1067 = vsel %vm1063, %v1058, %v870
        %v1068 = vsel %vm1063, %v1059, %v877
        %v1069 = vsel %vm1063, %v1060, %v884
        %v1070 = vsel %vm1063, %v1061, %v891
        %v1071 = vsel %vm1063, %v1062, %v898
        %v1072 = vsel %vm1011, %v905, %v961
        %v1073 = vsel %vm1011, %v912, %v968
        %v1074 = vsel %vm1011, %v919, %v975
        %v1075 = vsel %vm1011, %v926, %v982
        %v1076 = vsel %vm1011, %v933, %v989
        %v1077 = vsel %vm1011, %v940, %v996
        %v1078 = vsel %vm1011, %v947, %v1003
        %v1079 = vsel %vm1011, %v954, %v1010
        %v1080 = vmax.f32 %v1064, %v1065
        %v1081 = vsel %vm447, %v1072, -inf
        %v1082 = vsel %vm447, %v1073, -inf
        %v1083 = vmax.f32 %v1081, %v1082
        %v1084 = vmax.f32 %v1066, %v1067
        %v1085 = vsel %vm447, %v1074, -inf
        %v1086 = vsel %vm447, %v1075, -inf
        %v1087 = vmax.f32 %v1085, %v1086
        %v1088 = vmax.f32 %v1068, %v1069
        %v1089 = vsel %vm447, %v1076, -inf
        %v1090 = vsel %vm447, %v1077, -inf
        %v1091 = vmax.f32 %v1089, %v1090
        %v1092 = vmax.f32 %v1070, %v1071
        %v1093 = vsel %vm447, %v1078, -inf
        %v1094 = vsel %vm447, %v1079, -inf
        %v1095 = vmax.f32 %v1093, %v1094
        %v1096 = vsel %vm447, %v1080, -inf
        %v1097 = vrot.slane %v1096, 4
        %v1098 = vmax.f32 %v1096, %v1097
        %v1099 = vrot.slane %v1098, 2
        %v1100 = vmax.f32 %v1098, %v1099
        %v1101 = vrot.slane %v1100, 1
        %v1102 = vmax.f32 %v1100, %v1101
        %v1103 = vsel %vm447, %v1084, -inf
        %v1104 = vrot.slane %v1103, 4
        %v1105 = vmax.f32 %v1103, %v1104
        %v1106 = vrot.slane %v1105, 2
        %v1107 = vmax.f32 %v1105, %v1106
        %v1108 = vrot.slane %v1107, 1
        %v1109 = vmax.f32 %v1107, %v1108
        %v1110 = vsel %vm447, %v1088, -inf
        %v1111 = vrot.slane %v1110, 4
        %v1112 = vmax.f32 %v1110, %v1111
        %v1113 = vrot.slane %v1112, 2
        %v1114 = vmax.f32 %v1112, %v1113
        %v1115 = vrot.slane %v1114, 1
        %v1116 = vmax.f32 %v1114, %v1115
        %v1117 = vsel %vm447, %v1092, -inf
        %v1118 = vrot.slane %v1117, 4
        %v1119 = vmax.f32 %v1117, %v1118
        %v1120 = vrot.slane %v1119, 2
        %v1121 = vmax.f32 %v1119, %v1120
        %v1122 = vrot.slane %v1121, 1
        %v1123 = vmax.f32 %v1121, %v1122
        %v1124 = vsel %vm504, %v1080, -inf
        %v1125 = vrot.slane %v1124, 4
        %v1126 = vmax.f32 %v1124, %v1125
        %v1127 = vrot.slane %v1126, 2
        %v1128 = vmax.f32 %v1126, %v1127
        %v1129 = vrot.slane %v1128, 1
        %v1130 = vmax.f32 %v1128, %v1129
        %v1131 = vsel %vm504, %v1084, -inf
        %v1132 = vrot.slane %v1131, 4
        %v1133 = vmax.f32 %v1131, %v1132
        %v1134 = vrot.slane %v1133, 2
        %v1135 = vmax.f32 %v1133, %v1134
        %v1136 = vrot.slane %v1135, 1
        %v1137 = vmax.f32 %v1135, %v1136
        %v1138 = vsel %vm504, %v1088, -inf
        %v1139 = vrot.slane %v1138, 4
        %v1140 = vmax.f32 %v1138, %v1139
        %v1141 = vrot.slane %v1140, 2
        %v1142 = vmax.f32 %v1140, %v1141
        %v1143 = vrot.slane %v1142, 1
        %v1144 = vmax.f32 %v1142, %v1143
        %v1145 = vsel %vm504, %v1092, -inf
        %v1146 = vrot.slane %v1145, 4
        %v1147 = vmax.f32 %v1145, %v1146
        %v1148 = vrot.slane %v1147, 2
        %v1149 = vmax.f32 %v1147, %v1148
        %v1150 = vrot.slane %v1149, 1
        %v1151 = vmax.f32 %v1149, %v1150
        %v1152 = vsel %vm561, %v1080, -inf
        %v1153 = vrot.slane %v1152, 4
        %v1154 = vmax.f32 %v1152, %v1153
        %v1155 = vrot.slane %v1154, 2
        %v1156 = vmax.f32 %v1154, %v1155
        %v1157 = vrot.slane %v1156, 1
        %v1158 = vmax.f32 %v1156, %v1157
        %v1159 = vsel %vm561, %v1084, -inf
        %v1160 = vrot.slane %v1159, 4
        %v1161 = vmax.f32 %v1159, %v1160
        %v1162 = vrot.slane %v1161, 2
        %v1163 = vmax.f32 %v1161, %v1162
        %v1164 = vrot.slane %v1163, 1
        %v1165 = vmax.f32 %v1163, %v1164
        %v1166 = vsel %vm561, %v1088, -inf
        %v1167 = vrot.slane %v1166, 4
        %v1168 = vmax.f32 %v1166, %v1167
        %v1169 = vrot.slane %v1168, 2
        %v1170 = vmax.f32 %v1168, %v1169
        %v1171 = vrot.slane %v1170, 1
        %v1172 = vmax.f32 %v1170, %v1171
        %v1173 = vsel %vm561, %v1092, -inf
        %v1174 = vrot.slane %v1173, 4
        %v1175 = vmax.f32 %v1173, %v1174
        %v1176 = vrot.slane %v1175, 2
        %v1177 = vmax.f32 %v1175, %v1176
        %v1178 = vrot.slane %v1177, 1
        %v1179 = vmax.f32 %v1177, %v1178
        %v1180 = vsel %vm618, %v1080, -inf
        %v1181 = vrot.slane %v1180, 4
        %v1182 = vmax.f32 %v1180, %v1181
        %v1183 = vrot.slane %v1182, 2
        %v1184 = vmax.f32 %v1182, %v1183
        %v1185 = vrot.slane %v1184, 1
        %v1186 = vmax.f32 %v1184, %v1185
        %v1187 = vsel %vm618, %v1084, -inf
        %v1188 = vrot.slane %v1187, 4
        %v1189 = vmax.f32 %v1187, %v1188
        %v1190 = vrot.slane %v1189, 2
        %v1191 = vmax.f32 %v1189, %v1190
        %v1192 = vrot.slane %v1191, 1
        %v1193 = vmax.f32 %v1191, %v1192
        %v1194 = vsel %vm618, %v1088, -inf
        %v1195 = vrot.slane %v1194, 4
        %v1196 = vmax.f32 %v1194, %v1195
        %v1197 = vrot.slane %v1196, 2
        %v1198 = vmax.f32 %v1196, %v1197
        %v1199 = vrot.slane %v1198, 1
        %v1200 = vmax.f32 %v1198, %v1199
        %v1201 = vsel %vm618, %v1092, -inf
        %v1202 = vrot.slane %v1201, 4
        %v1203 = vmax.f32 %v1201, %v1202
        %v1204 = vrot.slane %v1203, 2
        %v1205 = vmax.f32 %v1203, %v1204
        %v1206 = vrot.slane %v1205, 1
        %v1207 = vmax.f32 %v1205, %v1206
        %v1208 = vsel %vm447, %v1083, -inf
        %v1209 = vrot.slane %v1208, 4
        %v1210 = vmax.f32 %v1208, %v1209
        %v1211 = vrot.slane %v1210, 2
        %v1212 = vmax.f32 %v1210, %v1211
        %v1213 = vrot.slane %v1212, 1
        %v1214 = vmax.f32 %v1212, %v1213
        %v1215 = vsel %vm447, %v1087, -inf
        %v1216 = vrot.slane %v1215, 4
        %v1217 = vmax.f32 %v1215, %v1216
        %v1218 = vrot.slane %v1217, 2
        %v1219 = vmax.f32 %v1217, %v1218
        %v1220 = vrot.slane %v1219, 1
        %v1221 = vmax.f32 %v1219, %v1220
        %v1222 = vsel %vm447, %v1091, -inf
        %v1223 = vrot.slane %v1222, 4
        %v1224 = vmax.f32 %v1222, %v1223
        %v1225 = vrot.slane %v1224, 2
        %v1226 = vmax.f32 %v1224, %v1225
        %v1227 = vrot.slane %v1226, 1
        %v1228 = vmax.f32 %v1226, %v1227
        %v1229 = vsel %vm447, %v1095, -inf
        %v1230 = vrot.slane %v1229, 4
        %v1231 = vmax.f32 %v1229, %v1230
        %v1232 = vrot.slane %v1231, 2
        %v1233 = vmax.f32 %v1231, %v1232
        %v1234 = vrot.slane %v1233, 1
        %v1235 = vmax.f32 %v1233, %v1234
        %v1236 = vsel %vm1011, %v1102, %v1130
        %v1237 = vsel %vm1011, %v1109, %v1137
        %v1238 = vsel %vm1011, %v1116, %v1144
        %v1239 = vsel %vm1011, %v1123, %v1151
        %v1240 = vsel %vm447, %v1236, %v1158
        %v1241 = vsel %vm447, %v1237, %v1165
        %v1242 = vsel %vm447, %v1238, %v1172
        %v1243 = vsel %vm447, %v1239, %v1179
        %v1244 = vsel %vm1028, %v1240, %v1186
        %v1245 = vsel %vm1028, %v1241, %v1193
        %v1246 = vsel %vm1028, %v1242, %v1200
        %v1247 = vsel %vm1028, %v1243, %v1207
        %v1248 = vsel %vm387, %v1244, %v1214
        %v1249 = vsel %vm387, %v1245, %v1221
        %v1250 = vsel %vm387, %v1246, %v1228
        %v1251 = vsel %vm387, %v1247, %v1235
        %v1252 = vsel %vm1045, %v1248, -inf
        %v1253 = vsel %vm1045, %v1249, -inf
        %v1254 = vsel %vm1045, %v1250, -inf
        %v1255 = vsel %vm1045, %v1251, -inf
        %v1256 = vmax.f32 %v1252, %v1253
        %v1257 = vmax.f32 %v1254, %v1255
        %v1258 = vmax.f32 %v1256, %v1257
        %v1259 = vsel %vm1045, %v1258, -inf
        %v1260 = vrot.slane %v1259, 4
        %v1261 = vmax.f32 %v1259, %v1260
        %v1262 = vrot.slane %v1261, 2
        %v1263 = vmax.f32 %v1261, %v1262
        %v1264 = vrot.slane %v1263, 1
        %v1265 = vmax.f32 %v1263, %v1264
        %1266 = vst [vmem:[%s336] sm:$0x1] %v1265
        %1267 = vst [vmem:[%s336 + $0x1] sm:$0x1f] %v1248
        %1268 = vst [vmem:[%s336 + $0x6] sm:$0x1f] %v1249
        %1269 = vst [vmem:[%s336 + $0xb] sm:$0x1f] %v1250
        %1270 = vst [vmem:[%s336 + $0x10] sm:$0x1f] %v1251
        %1271 = vst [vmem:[%s336 + $0x15] sm:$0xff] %v1064
        %1272 = vst [vmem:[%s336 + $0x1d] sm:$0x3] %v1072
        %1273 = vst [vmem:[%s336 + $0x1f] sm:$0xff] %v1065
        %1274 = vst [vmem:[%s336 + $0x27] sm:$0x3] %v1073
        %1275 = vst [vmem:[%s336 + $0x29] sm:$0xff] %v1066
        %1276 = vst [vmem:[%s336 + $0x31] sm:$0x3] %v1074
        %1277 = vst [vmem:[%s336 + $0x33] sm:$0xff] %v1067
        %1278 = vst [vmem:[%s336 + $0x3b] sm:$0x3] %v1075
        %1279 = vst [vmem:[%s336 + $0x3d] sm:$0xff] %v1068
        %1280 = vst [vmem:[%s336 + $0x45] sm:$0x3] %v1076
        %1281 = vst [vmem:[%s336 + $0x47] sm:$0xff] %v1069
        %1282 = vst [vmem:[%s336 + $0x4f] sm:$0x3] %v1077
        %1283 = vst [vmem:[%s336 + $0x51] sm:$0xff] %v1070
        %1284 = vst [vmem:[%s336 + $0x59] sm:$0x3] %v1078
        %1285 = vst [vmem:[%s336 + $0x5b] sm:$0xff] %v1071
        %1286 = vst [vmem:[%s336 + $0x63] sm:$0x3] %v1079
        %1287 = vst [vmem:[%s336 + $0x65] sm:$0xff] %v385
        %1288 = vst [vmem:[%s336 + $0x6d] sm:$0xff] %v386
        %1289 = vst [vmem:[%s336 + $0x75] sm:$0xf] %v390
        %1290 = vst [vmem:[%s336 + $0x79] sm:$0xff] %v391
        %1291 = vst [vmem:[%s336 + $0x81] sm:$0xff] %v392
        %1292 = vst [vmem:[%s336 + $0x89] sm:$0xf] %v394
        %1293 = vst [vmem:[%s336 + $0x8d] sm:$0xff] %v395
        %1294 = vst [vmem:[%s336 + $0x95] sm:$0xff] %v396
        %1295 = vst [vmem:[%s336 + $0x9d] sm:$0xf] %v398
        %1296 = vst [vmem:[%s336 + $0xa1] sm:$0xff] %v399
        %1297 = vst [vmem:[%s336 + $0xa9] sm:$0xff] %v400
        %1298 = vst [vmem:[%s336 + $0xb1] sm:$0xf] %v402
        %1299 = vst [vmem:[%s336 + $0xb5] sm:$0xff] %v403
        %1300 = vst [vmem:[%s336 + $0xbd] sm:$0xff] %v404
        %1301 = vst [vmem:[%s336 + $0xc5] sm:$0xf] %v406
        %1302 = vst [vmem:[%s336 + $0xc9] sm:$0xff] %v407
        %1303 = vst [vmem:[%s336 + $0xd1] sm:$0xff] %v408
        %1304 = vst [vmem:[%s336 + $0xd9] sm:$0xf] %v410
        %1305 = vst [vmem:[%s336 + $0xdd] sm:$0xff] %v411
        %1306 = vst [vmem:[%s336 + $0xe5] sm:$0xff] %v412
        %1307 = vst [vmem:[%s336 + $0xed] sm:$0xf] %v414
        %1308 = vst [vmem:[%s336 + $0xf1] sm:$0xff] %v415
        %1309 = vst [vmem:[%s336 + $0xf9] sm:$0xff] %v416
        %1310 = vst [vmem:[%s336 + $0x101] sm:$0xf] %v418
        %1311 = vst [vmem:[%s336 + $0x105] sm:$0xff] %v419
        %1312 = vst [vmem:[%s336 + $0x10d] sm:$0xff] %v420
        %1313 = vst [vmem:[%s336 + $0x115] sm:$0xf] %v422
        %1314 = vst [vmem:[%s336 + $0x119] sm:$0xff] %v423
        %1315 = vst [vmem:[%s336 + $0x121] sm:$0xff] %v424
        %1316 = vst [vmem:[%s336 + $0x129] sm:$0xf] %v426
        %1317 = vst [vmem:[%s336 + $0x12d] sm:$0xff] %v427
        %1318 = vst [vmem:[%s336 + $0x135] sm:$0xff] %v428
        %1319 = vst [vmem:[%s336 + $0x13d] sm:$0xf] %v430
        %1320 = vst [vmem:[%s336 + $0x141] sm:$0xff] %v431
        %1321 = vst [vmem:[%s336 + $0x149] sm:$0xff] %v432
        %1322 = vst [vmem:[%s336 + $0x151] sm:$0xf] %v434
        %1323 = vst [vmem:[%s336 + $0x155] sm:$0xff] %v435
        %1324 = vst [vmem:[%s336 + $0x15d] sm:$0xff] %v436
        %1325 = vst [vmem:[%s336 + $0x165] sm:$0xf] %v438
        %1326 = vst [vmem:[%s336 + $0x169] sm:$0xff] %v439
        %1327 = vst [vmem:[%s336 + $0x171] sm:$0xff] %v440
        %1328 = vst [vmem:[%s336 + $0x179] sm:$0xf] %v442
        %1329 = vst [vmem:[%s336 + $0x17d] sm:$0xff] %v443
        %1330 = vst [vmem:[%s336 + $0x185] sm:$0xff] %v444
        %1331 = vst [vmem:[%s336 + $0x18d] sm:$0xf] %v446
        %s1332 = sand.u32 %s49, 1
        %s1333 = scalar_lea.sflag [#allocation4], %s1332
        %s1334 = sand.u32 %s49, 1
        %s1335 = smul.addr %s1334, 408
        %s1336 = scalar_lea.vmem [#allocation3], %s1335
        // Predicated region
        $region63: #{tpu_custom_call.1} parent=57 // pred_check
          %p1337 = pneg %p59
        $region64: #{tpu_custom_call.1} parent=57 // pred_check_branch
          %1339 = sbr.rel (%p1337) target = $region66
        $region65: #{tpu_custom_call.1} parent=57 // pred_region
          %s1341 = ssub.s32 6528, 6528
          %1342 = vsyncadd %s1333, %s1341
          %s1343 = smul.addr %s15, 128
          %s1344 = scalar_lea.hbm %s1, %s1343
          %s1345 = sshll.u32 %s1336, 4
          %s1346 = int_to_ptr.vmem [resolvable:$true] %s1345
          %1351 = dma.vmem_to_hbm [thread:$0]  %s1346, 6528, %s1344, %s1333, 128, 256, 8
        $region66: #{tpu_custom_call.1} parent=57 // pred_fallthru
          _
      $region58: #{tpu_custom_call.1} parent=5 // pred_fallthru
        _
      %p1352 = scmp.le.s32.totalorder 2, %s10
      // Predicated region
      $region67: #{tpu_custom_call.1} parent=5 // pred_check
        %p1353 = pneg %p1352
      $region68: #{tpu_custom_call.1} parent=5 // pred_check_branch
        %1355 = sbr.rel (%p1353) target = $region70
      $region69: #{tpu_custom_call.1} parent=5 // pred_region
        %s1356 = ssub.s32 %s10, 2
        // Predicated region
        $region71: #{tpu_custom_call.1} parent=69 // pred_check
          %p1357 = pneg %p65
        $region72: #{tpu_custom_call.1} parent=69 // pred_check_branch
          %1359 = sbr.rel (%p1357) target = $region74
        $region73: #{tpu_custom_call.1} parent=69 // pred_region
          %s1360 = sand.u32 %s50, 1
          %s1361 = scalar_lea.sflag [#allocation4], %s1360
          %s1362 = sand.u32 %s50, 1
          %s1363 = smul.addr %s1362, 408
          %s1364 = scalar_lea.vmem [#allocation3], %s1363
          %1365 = dma.done %s1361, 6528
        $region74: #{tpu_custom_call.1} parent=69 // pred_fallthru
          _
      $region70: #{tpu_custom_call.1} parent=5 // pred_fallthru
        _
    $region6: #{tpu_custom_call.1} parent=1 // loop_footer
      %s14 = sadd.s32 1, %s10
    $region7: #{tpu_custom_call.1} parent=1 // loop_footer_branch
      %9 = sbr.rel target = $region3
    $region8: #{tpu_custom_call.1} parent=1 // loop_exit
      _
    %1366 = vsyncpa [#allocation4], 1
    %s1367 = scalar_lea.sflag [#allocation4], 1
    %1368 = vsyncpa %s1367, 1

</llo_original>
